<compile_context>
chip_gen: v5e
topology: v5e:2x2
jax: 0.10.0
libtpu: 0.0.40
codegen_flags: <defaults>
</compile_context>

<pallas_src>
import functools

import jax
import jax.numpy as jnp
from jax.experimental import pallas as pl
from jax.experimental.pallas import tpu as pltpu


def _conv3x3_shuffle_mish_kernel(x_band_ref, x_top_ref, x_bot_ref, w_ref, b_ref,
                                 o_ref, xpad_ref, *, r):
    """One (batch, row-band) grid step.

    x_band_ref: (1, TH, W, Cin)    current row band (matmul dtype, e.g. bf16)
    x_top_ref : (1, 1,  W, Cin)    row above the band (clamped; zeroed at edge)
    x_bot_ref : (1, 1,  W, Cin)    row below the band (clamped; zeroed at edge)
    w_ref     : (3, 3, Cin, CT)    conv weights; columns ordered (ry, rx, c)
    b_ref     : (1, 1, CT)         f32 bias, same column ordering
    o_ref     : (1, TH, r, W, rC)  pixel-shuffled output band
    xpad_ref  : (TH+2, W+2, Cin)   VMEM scratch: zero-padded input tile
    """
    TH = x_band_ref.shape[1]
    W = x_band_ref.shape[2]
    Cin = x_band_ref.shape[3]
    CT = b_ref.shape[2]
    rC = CT // r

    t = pl.program_id(1)
    n_t = pl.num_programs(1)

    # ---- build the zero-padded (TH+2, W+2, Cin) tile in VMEM scratch ----
    band = x_band_ref[0]                                    # (TH, W, Cin)
    top = x_top_ref[0]                                      # (1,  W, Cin)
    bot = x_bot_ref[0]                                      # (1,  W, Cin)
    top = jnp.where(t == 0, jnp.zeros_like(top), top)       # fused pad along H
    bot = jnp.where(t == n_t - 1, jnp.zeros_like(bot), bot)

    zcol = jnp.zeros((TH + 2, 1, Cin), xpad_ref.dtype)
    xpad_ref[:, 0:1, :] = zcol                              # fused pad along W
    xpad_ref[:, W + 1:W + 2, :] = zcol
    xpad_ref[0:1, 1:W + 1, :] = top
    xpad_ref[TH + 1:TH + 2, 1:W + 1, :] = bot
    xpad_ref[1:TH + 1, 1:W + 1, :] = band

    # ---- 9-tap conv: static scratch views -> 9 K=Cin matmuls (no concats) ----
    acc = None
    for dy in range(3):                                     # static unrolled taps
        for dx in range(3):
            tap = xpad_ref[dy:dy + TH, dx:dx + W, :]        # (TH, W, Cin) view
            part = jax.lax.dot_general(
                tap, w_ref[dy, dx],
                (((2,), (0,)), ((), ())),
                preferred_element_type=jnp.float32)         # (TH, W, CT) f32
            if acc is None:
                acc = part + b_ref[...]                     # bias folded into init
            else:
                acc = acc + part

    # ---- fused pixel-shuffle + mish epilogue, one rC-slab per ry ----
    # mish(y) = y * tanh(softplus(y)) = y * (u^2 + 2u)/(u^2 + 2u + 2), u = e^y
    for ry in range(r):
        a = acc[:, :, ry * rC:(ry + 1) * rC]                # (TH, W, rC)
        u = jnp.exp(jnp.minimum(a, 20.0))                   # clamp: exp can't overflow
        num = u * (u + 2.0)
        y = a * (num / (num + 2.0))
        o_ref[0, :, ry, :, :] = y.astype(o_ref.dtype)       # lane-dense, no reshape


def upsample_block_forward(x_nchw, weight, bias, up_scale, *,
                           tile_h=None,
                           matmul_dtype=jnp.bfloat16,
                           out_block_budget_bytes=4 << 20,      # v7x-safe; ~12-16 MiB on v5e/v6e
                           vmem_limit_bytes=40 * 1024 * 1024,   # v7x-safe; ~96 MiB on v5e/v6e
                           channels_last=False):
    """Forward of UpsampleBLock.

    x_nchw : (N, Cin, H, W)           like the torch module input
    weight : (Cout*r*r, Cin, 3, 3)    nn.Conv2d weight (OIHW)
    bias   : (Cout*r*r,)              nn.Conv2d bias
    returns: (N, Cout, H*r, W*r) NCHW (or (N, H*r, W*r, Cout) if channels_last)
    """
    N, Cin, H, W = x_nchw.shape
    r = int(up_scale)
    CT = weight.shape[0]
    C = CT // (r * r)
    rC = r * C
    assert weight.shape == (CT, Cin, 3, 3) and bias.shape == (CT,)
    out_dtype = x_nchw.dtype

    # ---- one-time parameter re-layout (tiny tensors, negligible cost) ----
    # wk[dy, dx, ci, ry*rC + rx*C + c] = weight[c*r*r + ry*r + rx, ci, dy, dx]
    wk = weight.reshape(C, r, r, Cin, 3, 3)                         # (c,ry,rx,ci,dy,dx)
    wk = jnp.transpose(wk, (4, 5, 3, 1, 2, 0)).reshape(3, 3, Cin, CT)
    wk = wk.astype(matmul_dtype)
    bk = bias.reshape(C, r, r).astype(jnp.float32)                  # (c,ry,rx)
    bk = jnp.transpose(bk, (1, 2, 0)).reshape(1, 1, CT)             # (ry,rx,c) order

    # ---- input layout: NCHW -> NHWC, matmul operands in bf16 ----
    x_nhwc = jnp.transpose(x_nchw, (0, 2, 3, 1)).astype(matmul_dtype)

    # ---- row-band tile height: 8-aligned divisor of H within the budget ----
    if tile_h is None:
        out_row_bytes = r * W * rC * jnp.dtype(out_dtype).itemsize
        cands = [d for d in range(8, H + 1, 8) if H % d == 0] or [H]
        fitting = [d for d in cands if d * out_row_bytes <= out_block_budget_bytes]
        if N == 1:  # v7x megacore balance: prefer an even number of bands
            even = [d for d in fitting if (H // d) >= 2 and (H // d) % 2 == 0]
            fitting = even or fitting
        tile_h = max(fitting) if fitting else min(cands)
    TH = int(tile_h)
    assert H % TH == 0 and (TH % 8 == 0 or TH == H), (H, TH)
    n_th = H // TH
    # TODO(synk): add W tiling so per-tile f32 temporaries (~TH*W*CT) stay bounded
    # on very wide images; currently only H is tiled.

    kernel = functools.partial(_conv3x3_shuffle_mish_kernel, r=r)

    out5 = pl.pallas_call(
        kernel,
        out_shape=jax.ShapeDtypeStruct((N, H, r, W, rC), out_dtype),
        grid_spec=pltpu.PrefetchScalarGridSpec(
            num_scalar_prefetch=0,
            grid=(N, n_th),
            in_specs=[
                # current band
                pl.BlockSpec((1, TH, W, Cin), lambda n, t: (n, t, 0, 0)),
                # halo row above (block size 1 along H -> block index == row index)
                pl.BlockSpec((1, 1, W, Cin),
                             lambda n, t: (n, jnp.maximum(t * TH - 1, 0), 0, 0)),
                # halo row below
                pl.BlockSpec((1, 1, W, Cin),
                             lambda n, t: (n, jnp.minimum((t + 1) * TH, H - 1), 0, 0)),
                # weights / bias stay resident (constant block index)
                pl.BlockSpec((3, 3, Cin, CT), lambda n, t: (0, 0, 0, 0)),
                pl.BlockSpec((1, 1, CT), lambda n, t: (0, 0, 0)),
            ],
            out_specs=pl.BlockSpec((1, TH, r, W, rC), lambda n, t: (n, t, 0, 0, 0)),
            scratch_shapes=[pltpu.VMEM((TH + 2, W + 2, Cin), matmul_dtype)],
        ),
        compiler_params=pltpu.CompilerParams(
            dimension_semantics=("parallel", "parallel"),
            vmem_limit_bytes=int(vmem_limit_bytes),
        ),
    )(x_nhwc, x_nhwc, x_nhwc, wk, bk)

    # (N, H, r, W, r*C) -> (N, H*r, W*r, C) is a pure row-major reshape (free);
    # this *is* the pixel shuffle in NHWC.
    y = out5.reshape(N, H * r, W * r, C)
    if channels_last:
        return y  # skip the layout transpose when downstream accepts NHWC
    return jnp.transpose(y, (0, 3, 1, 2))


if __name__ == "__main__":
    N, Cin, H, W = 2, 4, 16, 16
    out_channels, up_scale = 4, 2
    CT = out_channels * up_scale ** 2

    key = jax.random.PRNGKey(0)
    kx, kw, kb = jax.random.split(key, 3)

    x = jax.random.normal(kx, (N, Cin, H, W), dtype=jnp.float32)

    # nn.Conv2d-style init (kaiming-uniform-ish bound), torch OIHW layout.
    fan_in = Cin * 3 * 3
    bound = 1.0 / (fan_in ** 0.5)
    weight = jax.random.uniform(kw, (CT, Cin, 3, 3),
                                minval=-bound, maxval=bound, dtype=jnp.float32)
    bias = jax.random.uniform(kb, (CT,),
                              minval=-bound, maxval=bound, dtype=jnp.float32)

    # tile_h=8 -> 2 row bands per image, exercising the cross-band halo path.
    out = upsample_block_forward(x, weight, bias, up_scale, tile_h=8)
    out = jax.block_until_ready(out)
    assert out.shape == (N, out_channels, H * up_scale, W * up_scale), out.shape

    # Pure-JAX reference of the torch module (conv -> pixel_shuffle -> mish).
    ref = jax.lax.conv_general_dilated(
        x, weight, window_strides=(1, 1), padding=((1, 1), (1, 1)),
        dimension_numbers=("NCHW", "OIHW", "NCHW"))
    ref = ref + bias[None, :, None, None]
    ref = ref.reshape(N, out_channels, up_scale, up_scale, H, W)
    ref = jnp.transpose(ref, (0, 1, 4, 2, 5, 3)).reshape(
        N, out_channels, H * up_scale, W * up_scale)
    ref = ref * jnp.tanh(jax.nn.softplus(ref))

    max_err = float(jnp.max(jnp.abs(out - ref)))
    # Tolerance covers bf16 matmul operands vs. the f32 reference.
    assert max_err < 5e-2, f"max abs error {max_err}"
    print("KERNEL_OK")
</pallas_src>

<mosaic_0001>
module attributes {stable_mosaic.version = 11 : i64} {
  func.func @_conv3x3_shuffle_mish_kernel(%arg0: i32, %arg1: i32, %arg2: memref<1x8x16x4xbf16, #tpu.memory_space<vmem>>, %arg3: memref<1x1x16x4xbf16, #tpu.memory_space<vmem>>, %arg4: memref<1x1x16x4xbf16, #tpu.memory_space<vmem>>, %arg5: memref<3x3x4x16xbf16, #tpu.memory_space<vmem>>, %arg6: memref<1x1x16xf32, #tpu.memory_space<vmem>>, %arg7: memref<1x8x2x16x8xf32, #tpu.memory_space<vmem>>, %arg8: memref<10x18x4xbf16, #tpu.memory_space<vmem>>) attributes {dimension_semantics = [#tpu.dimension_semantics<parallel>, #tpu.dimension_semantics<parallel>], iteration_bounds = array<i64: 2, 2>, scalar_prefetch = 0 : i64, scratch_operands = 1 : i64, tpu.core_type = #tpu.core_type<tc>, window_params = [{transform_indices = @transform_0, window_bounds = array<i64: 1, 8, 16, 4>}, {transform_indices = @transform_1, window_bounds = array<i64: 1, 1, 16, 4>}, {transform_indices = @transform_2, window_bounds = array<i64: 1, 1, 16, 4>}, {pipeline_mode = #tpu.pipeline_mode<synchronous>, transform_indices = @transform_3, window_bounds = array<i64: 3, 3, 4, 16>}, {pipeline_mode = #tpu.pipeline_mode<synchronous>, transform_indices = @transform_4, window_bounds = array<i64: 1, 1, 16>}, {transform_indices = @transform_5, window_bounds = array<i64: 1, 8, 2, 16, 8>}]} {
    %c0 = arith.constant 0 : index
    %c0_0 = arith.constant 0 : index
    %c0_1 = arith.constant 0 : index
    %c0_2 = arith.constant 0 : index
    %0 = vector.load %arg2[%c0, %c0_0, %c0_1, %c0_2] : memref<1x8x16x4xbf16, #tpu.memory_space<vmem>>, vector<1x8x16x4xbf16>
    %1 = vector.shape_cast %0 : vector<1x8x16x4xbf16> to vector<8x16x4xbf16>
    %c0_3 = arith.constant 0 : index
    %c0_4 = arith.constant 0 : index
    %c0_5 = arith.constant 0 : index
    %c0_6 = arith.constant 0 : index
    %2 = vector.load %arg3[%c0_3, %c0_4, %c0_5, %c0_6] : memref<1x1x16x4xbf16, #tpu.memory_space<vmem>>, vector<1x1x16x4xbf16>
    %3 = vector.shape_cast %2 : vector<1x1x16x4xbf16> to vector<1x16x4xbf16>
    %c0_7 = arith.constant 0 : index
    %c0_8 = arith.constant 0 : index
    %c0_9 = arith.constant 0 : index
    %c0_10 = arith.constant 0 : index
    %4 = vector.load %arg4[%c0_7, %c0_8, %c0_9, %c0_10] : memref<1x1x16x4xbf16, #tpu.memory_space<vmem>>, vector<1x1x16x4xbf16>
    %5 = vector.shape_cast %4 : vector<1x1x16x4xbf16> to vector<1x16x4xbf16>
    %c0_i32 = arith.constant 0 : i32
    %6 = arith.cmpi eq, %arg1, %c0_i32 : i32
    %cst = arith.constant 0.000000e+00 : bf16
    %7 = vector.broadcast %cst : bf16 to vector<1x16x4xbf16>
    %8 = arith.select %6, %7, %3 : vector<1x16x4xbf16>
    %c1_i32 = arith.constant 1 : i32
    %9 = arith.cmpi eq, %arg1, %c1_i32 : i32
    %cst_11 = arith.constant 0.000000e+00 : bf16
    %10 = vector.broadcast %cst_11 : bf16 to vector<1x16x4xbf16>
    %11 = arith.select %9, %10, %5 : vector<1x16x4xbf16>
    %cst_12 = arith.constant 0.000000e+00 : bf16
    %12 = vector.broadcast %cst_12 : bf16 to vector<10x1x4xbf16>
    %c0_13 = arith.constant 0 : index
    %c0_14 = arith.constant 0 : index
    %c0_15 = arith.constant 0 : index
    %13 = vector.load %arg8[%c0_13, %c0_14, %c0_15] : memref<10x18x4xbf16, #tpu.memory_space<vmem>>, vector<10x1x4xbf16>
    tpu.vector_store %arg8[%c0_13, %c0_14, %c0_15], %12 {strides = array<i32>} : memref<10x18x4xbf16, #tpu.memory_space<vmem>>, vector<10x1x4xbf16>,
    %c0_16 = arith.constant 0 : index
    %c17 = arith.constant 17 : index
    %c0_17 = arith.constant 0 : index
    %14 = vector.load %arg8[%c0_16, %c17, %c0_17] : memref<10x18x4xbf16, #tpu.memory_space<vmem>>, vector<10x1x4xbf16>
    tpu.vector_store %arg8[%c0_16, %c17, %c0_17], %12 {strides = array<i32>} : memref<10x18x4xbf16, #tpu.memory_space<vmem>>, vector<10x1x4xbf16>,
    %c0_18 = arith.constant 0 : index
    %c1 = arith.constant 1 : index
    %c0_19 = arith.constant 0 : index
    %15 = vector.load %arg8[%c0_18, %c1, %c0_19] : memref<10x18x4xbf16, #tpu.memory_space<vmem>>, vector<1x16x4xbf16>
    tpu.vector_store %arg8[%c0_18, %c1, %c0_19], %8 {strides = array<i32>} : memref<10x18x4xbf16, #tpu.memory_space<vmem>>, vector<1x16x4xbf16>,
    %c9 = arith.constant 9 : index
    %c1_20 = arith.constant 1 : index
    %c0_21 = arith.constant 0 : index
    %16 = vector.load %arg8[%c9, %c1_20, %c0_21] : memref<10x18x4xbf16, #tpu.memory_space<vmem>>, vector<1x16x4xbf16>
    tpu.vector_store %arg8[%c9, %c1_20, %c0_21], %11 {strides = array<i32>} : memref<10x18x4xbf16, #tpu.memory_space<vmem>>, vector<1x16x4xbf16>,
    %c1_22 = arith.constant 1 : index
    %c1_23 = arith.constant 1 : index
    %c0_24 = arith.constant 0 : index
    %17 = vector.load %arg8[%c1_22, %c1_23, %c0_24] : memref<10x18x4xbf16, #tpu.memory_space<vmem>>, vector<8x16x4xbf16>
    tpu.vector_store %arg8[%c1_22, %c1_23, %c0_24], %1 {strides = array<i32>} : memref<10x18x4xbf16, #tpu.memory_space<vmem>>, vector<8x16x4xbf16>,
    %c0_25 = arith.constant 0 : index
    %c0_26 = arith.constant 0 : index
    %c0_27 = arith.constant 0 : index
    %18 = vector.load %arg8[%c0_25, %c0_26, %c0_27] : memref<10x18x4xbf16, #tpu.memory_space<vmem>>, vector<8x16x4xbf16>
    %c0_28 = arith.constant 0 : index
    %c0_29 = arith.constant 0 : index
    %c0_30 = arith.constant 0 : index
    %c0_31 = arith.constant 0 : index
    %19 = vector.load %arg5[%c0_28, %c0_29, %c0_30, %c0_31] : memref<3x3x4x16xbf16, #tpu.memory_space<vmem>>, vector<1x1x4x16xbf16>
    %20 = vector.shape_cast %19 : vector<1x1x4x16xbf16> to vector<4x16xbf16>
    %cst_32 = arith.constant dense<0.000000e+00> : vector<8x16x16xf32>
    %21 = tpu.matmul %18, %20, %cst_32 {dimension_numbers = #tpu.dot_dimension_numbers<[2], [0], [0, 1], [1], [0, 0, 0, 1, 1, 1], [], []>} : vector<8x16x4xbf16>, vector<4x16xbf16>, vector<8x16x16xf32> -> vector<8x16x16xf32>
    %c0_33 = arith.constant 0 : index
    %c0_34 = arith.constant 0 : index
    %c0_35 = arith.constant 0 : index
    %22 = vector.load %arg6[%c0_33, %c0_34, %c0_35] : memref<1x1x16xf32, #tpu.memory_space<vmem>>, vector<1x1x16xf32>
    %23 = vector.broadcast %22 : vector<1x1x16xf32> to vector<8x16x16xf32>
    %24 = arith.addf %21, %23 : vector<8x16x16xf32>
    %c0_36 = arith.constant 0 : index
    %c1_37 = arith.constant 1 : index
    %c0_38 = arith.constant 0 : index
    %25 = vector.load %arg8[%c0_36, %c1_37, %c0_38] : memref<10x18x4xbf16, #tpu.memory_space<vmem>>, vector<8x16x4xbf16>
    %c0_39 = arith.constant 0 : index
    %c1_40 = arith.constant 1 : index
    %c0_41 = arith.constant 0 : index
    %c0_42 = arith.constant 0 : index
    %26 = vector.load %arg5[%c0_39, %c1_40, %c0_41, %c0_42] : memref<3x3x4x16xbf16, #tpu.memory_space<vmem>>, vector<1x1x4x16xbf16>
    %27 = vector.shape_cast %26 : vector<1x1x4x16xbf16> to vector<4x16xbf16>
    %cst_43 = arith.constant dense<0.000000e+00> : vector<8x16x16xf32>
    %28 = tpu.matmul %25, %27, %cst_43 {dimension_numbers = #tpu.dot_dimension_numbers<[2], [0], [0, 1], [1], [0, 0, 0, 1, 1, 1], [], []>} : vector<8x16x4xbf16>, vector<4x16xbf16>, vector<8x16x16xf32> -> vector<8x16x16xf32>
    %29 = arith.addf %24, %28 : vector<8x16x16xf32>
    %c0_44 = arith.constant 0 : index
    %c2 = arith.constant 2 : index
    %c0_45 = arith.constant 0 : index
    %30 = vector.load %arg8[%c0_44, %c2, %c0_45] : memref<10x18x4xbf16, #tpu.memory_space<vmem>>, vector<8x16x4xbf16>
    %c0_46 = arith.constant 0 : index
    %c2_47 = arith.constant 2 : index
    %c0_48 = arith.constant 0 : index
    %c0_49 = arith.constant 0 : index
    %31 = vector.load %arg5[%c0_46, %c2_47, %c0_48, %c0_49] : memref<3x3x4x16xbf16, #tpu.memory_space<vmem>>, vector<1x1x4x16xbf16>
    %32 = vector.shape_cast %31 : vector<1x1x4x16xbf16> to vector<4x16xbf16>
    %cst_50 = arith.constant dense<0.000000e+00> : vector<8x16x16xf32>
    %33 = tpu.matmul %30, %32, %cst_50 {dimension_numbers = #tpu.dot_dimension_numbers<[2], [0], [0, 1], [1], [0, 0, 0, 1, 1, 1], [], []>} : vector<8x16x4xbf16>, vector<4x16xbf16>, vector<8x16x16xf32> -> vector<8x16x16xf32>
    %34 = arith.addf %29, %33 : vector<8x16x16xf32>
    %c1_51 = arith.constant 1 : index
    %c0_52 = arith.constant 0 : index
    %c0_53 = arith.constant 0 : index
    %35 = vector.load %arg8[%c1_51, %c0_52, %c0_53] : memref<10x18x4xbf16, #tpu.memory_space<vmem>>, vector<8x16x4xbf16>
    %c1_54 = arith.constant 1 : index
    %c0_55 = arith.constant 0 : index
    %c0_56 = arith.constant 0 : index
    %c0_57 = arith.constant 0 : index
    %36 = vector.load %arg5[%c1_54, %c0_55, %c0_56, %c0_57] : memref<3x3x4x16xbf16, #tpu.memory_space<vmem>>, vector<1x1x4x16xbf16>
    %37 = vector.shape_cast %36 : vector<1x1x4x16xbf16> to vector<4x16xbf16>
    %cst_58 = arith.constant dense<0.000000e+00> : vector<8x16x16xf32>
    %38 = tpu.matmul %35, %37, %cst_58 {dimension_numbers = #tpu.dot_dimension_numbers<[2], [0], [0, 1], [1], [0, 0, 0, 1, 1, 1], [], []>} : vector<8x16x4xbf16>, vector<4x16xbf16>, vector<8x16x16xf32> -> vector<8x16x16xf32>
    %39 = arith.addf %34, %38 : vector<8x16x16xf32>
    %c1_59 = arith.constant 1 : index
    %c1_60 = arith.constant 1 : index
    %c0_61 = arith.constant 0 : index
    %40 = vector.load %arg8[%c1_59, %c1_60, %c0_61] : memref<10x18x4xbf16, #tpu.memory_space<vmem>>, vector<8x16x4xbf16>
    %c1_62 = arith.constant 1 : index
    %c1_63 = arith.constant 1 : index
    %c0_64 = arith.constant 0 : index
    %c0_65 = arith.constant 0 : index
    %41 = vector.load %arg5[%c1_62, %c1_63, %c0_64, %c0_65] : memref<3x3x4x16xbf16, #tpu.memory_space<vmem>>, vector<1x1x4x16xbf16>
    %42 = vector.shape_cast %41 : vector<1x1x4x16xbf16> to vector<4x16xbf16>
    %cst_66 = arith.constant dense<0.000000e+00> : vector<8x16x16xf32>
    %43 = tpu.matmul %40, %42, %cst_66 {dimension_numbers = #tpu.dot_dimension_numbers<[2], [0], [0, 1], [1], [0, 0, 0, 1, 1, 1], [], []>} : vector<8x16x4xbf16>, vector<4x16xbf16>, vector<8x16x16xf32> -> vector<8x16x16xf32>
    %44 = arith.addf %39, %43 : vector<8x16x16xf32>
    %c1_67 = arith.constant 1 : index
    %c2_68 = arith.constant 2 : index
    %c0_69 = arith.constant 0 : index
    %45 = vector.load %arg8[%c1_67, %c2_68, %c0_69] : memref<10x18x4xbf16, #tpu.memory_space<vmem>>, vector<8x16x4xbf16>
    %c1_70 = arith.constant 1 : index
    %c2_71 = arith.constant 2 : index
    %c0_72 = arith.constant 0 : index
    %c0_73 = arith.constant 0 : index
    %46 = vector.load %arg5[%c1_70, %c2_71, %c0_72, %c0_73] : memref<3x3x4x16xbf16, #tpu.memory_space<vmem>>, vector<1x1x4x16xbf16>
    %47 = vector.shape_cast %46 : vector<1x1x4x16xbf16> to vector<4x16xbf16>
    %cst_74 = arith.constant dense<0.000000e+00> : vector<8x16x16xf32>
    %48 = tpu.matmul %45, %47, %cst_74 {dimension_numbers = #tpu.dot_dimension_numbers<[2], [0], [0, 1], [1], [0, 0, 0, 1, 1, 1], [], []>} : vector<8x16x4xbf16>, vector<4x16xbf16>, vector<8x16x16xf32> -> vector<8x16x16xf32>
    %49 = arith.addf %44, %48 : vector<8x16x16xf32>
    %c2_75 = arith.constant 2 : index
    %c0_76 = arith.constant 0 : index
    %c0_77 = arith.constant 0 : index
    %50 = vector.load %arg8[%c2_75, %c0_76, %c0_77] : memref<10x18x4xbf16, #tpu.memory_space<vmem>>, vector<8x16x4xbf16>
    %c2_78 = arith.constant 2 : index
    %c0_79 = arith.constant 0 : index
    %c0_80 = arith.constant 0 : index
    %c0_81 = arith.constant 0 : index
    %51 = vector.load %arg5[%c2_78, %c0_79, %c0_80, %c0_81] : memref<3x3x4x16xbf16, #tpu.memory_space<vmem>>, vector<1x1x4x16xbf16>
    %52 = vector.shape_cast %51 : vector<1x1x4x16xbf16> to vector<4x16xbf16>
    %cst_82 = arith.constant dense<0.000000e+00> : vector<8x16x16xf32>
    %53 = tpu.matmul %50, %52, %cst_82 {dimension_numbers = #tpu.dot_dimension_numbers<[2], [0], [0, 1], [1], [0, 0, 0, 1, 1, 1], [], []>} : vector<8x16x4xbf16>, vector<4x16xbf16>, vector<8x16x16xf32> -> vector<8x16x16xf32>
    %54 = arith.addf %49, %53 : vector<8x16x16xf32>
    %c2_83 = arith.constant 2 : index
    %c1_84 = arith.constant 1 : index
    %c0_85 = arith.constant 0 : index
    %55 = vector.load %arg8[%c2_83, %c1_84, %c0_85] : memref<10x18x4xbf16, #tpu.memory_space<vmem>>, vector<8x16x4xbf16>
    %c2_86 = arith.constant 2 : index
    %c1_87 = arith.constant 1 : index
    %c0_88 = arith.constant 0 : index
    %c0_89 = arith.constant 0 : index
    %56 = vector.load %arg5[%c2_86, %c1_87, %c0_88, %c0_89] : memref<3x3x4x16xbf16, #tpu.memory_space<vmem>>, vector<1x1x4x16xbf16>
    %57 = vector.shape_cast %56 : vector<1x1x4x16xbf16> to vector<4x16xbf16>
    %cst_90 = arith.constant dense<0.000000e+00> : vector<8x16x16xf32>
    %58 = tpu.matmul %55, %57, %cst_90 {dimension_numbers = #tpu.dot_dimension_numbers<[2], [0], [0, 1], [1], [0, 0, 0, 1, 1, 1], [], []>} : vector<8x16x4xbf16>, vector<4x16xbf16>, vector<8x16x16xf32> -> vector<8x16x16xf32>
    %59 = arith.addf %54, %58 : vector<8x16x16xf32>
    %c2_91 = arith.constant 2 : index
    %c2_92 = arith.constant 2 : index
    %c0_93 = arith.constant 0 : index
    %60 = vector.load %arg8[%c2_91, %c2_92, %c0_93] : memref<10x18x4xbf16, #tpu.memory_space<vmem>>, vector<8x16x4xbf16>
    %c2_94 = arith.constant 2 : index
    %c2_95 = arith.constant 2 : index
    %c0_96 = arith.constant 0 : index
    %c0_97 = arith.constant 0 : index
    %61 = vector.load %arg5[%c2_94, %c2_95, %c0_96, %c0_97] : memref<3x3x4x16xbf16, #tpu.memory_space<vmem>>, vector<1x1x4x16xbf16>
    %62 = vector.shape_cast %61 : vector<1x1x4x16xbf16> to vector<4x16xbf16>
    %cst_98 = arith.constant dense<0.000000e+00> : vector<8x16x16xf32>
    %63 = tpu.matmul %60, %62, %cst_98 {dimension_numbers = #tpu.dot_dimension_numbers<[2], [0], [0, 1], [1], [0, 0, 0, 1, 1, 1], [], []>} : vector<8x16x4xbf16>, vector<4x16xbf16>, vector<8x16x16xf32> -> vector<8x16x16xf32>
    %64 = arith.addf %59, %63 : vector<8x16x16xf32>
    %65 = vector.extract_strided_slice %64 {offsets = [0, 0, 0], sizes = [8, 16, 8], strides = [1, 1, 1]} : vector<8x16x16xf32> to vector<8x16x8xf32>
    %cst_99 = arith.constant 2.000000e+01 : f32
    %66 = vector.broadcast %cst_99 : f32 to vector<8x16x8xf32>
    %67 = arith.minimumf %65, %66 : vector<8x16x8xf32>
    %68 = math.exp %67 : vector<8x16x8xf32>
    %cst_100 = arith.constant 2.000000e+00 : f32
    %69 = vector.broadcast %cst_100 : f32 to vector<8x16x8xf32>
    %70 = arith.addf %68, %69 : vector<8x16x8xf32>
    %71 = arith.mulf %68, %70 : vector<8x16x8xf32>
    %cst_101 = arith.constant 2.000000e+00 : f32
    %72 = vector.broadcast %cst_101 : f32 to vector<8x16x8xf32>
    %73 = arith.addf %71, %72 : vector<8x16x8xf32>
    %74 = arith.divf %71, %73 : vector<8x16x8xf32>
    %75 = arith.mulf %65, %74 : vector<8x16x8xf32>
    %c0_102 = arith.constant 0 : index
    %c0_103 = arith.constant 0 : index
    %c0_104 = arith.constant 0 : index
    %c0_105 = arith.constant 0 : index
    %c0_106 = arith.constant 0 : index
    %76 = vector.load %arg7[%c0_102, %c0_103, %c0_104, %c0_105, %c0_106] : memref<1x8x2x16x8xf32, #tpu.memory_space<vmem>>, vector<1x8x1x16x8xf32>
    %77 = vector.shape_cast %76 : vector<1x8x1x16x8xf32> to vector<8x16x8xf32>
    %78 = vector.shape_cast %75 : vector<8x16x8xf32> to vector<1x8x1x16x8xf32>
    tpu.vector_store %arg7[%c0_102, %c0_103, %c0_104, %c0_105, %c0_106], %78 {strides = array<i32>} : memref<1x8x2x16x8xf32, #tpu.memory_space<vmem>>, vector<1x8x1x16x8xf32>,
    %79 = vector.extract_strided_slice %64 {offsets = [0, 0, 8], sizes = [8, 16, 8], strides = [1, 1, 1]} : vector<8x16x16xf32> to vector<8x16x8xf32>
    %cst_107 = arith.constant 2.000000e+01 : f32
    %80 = vector.broadcast %cst_107 : f32 to vector<8x16x8xf32>
    %81 = arith.minimumf %79, %80 : vector<8x16x8xf32>
    %82 = math.exp %81 : vector<8x16x8xf32>
    %cst_108 = arith.constant 2.000000e+00 : f32
    %83 = vector.broadcast %cst_108 : f32 to vector<8x16x8xf32>
    %84 = arith.addf %82, %83 : vector<8x16x8xf32>
    %85 = arith.mulf %82, %84 : vector<8x16x8xf32>
    %cst_109 = arith.constant 2.000000e+00 : f32
    %86 = vector.broadcast %cst_109 : f32 to vector<8x16x8xf32>
    %87 = arith.addf %85, %86 : vector<8x16x8xf32>
    %88 = arith.divf %85, %87 : vector<8x16x8xf32>
    %89 = arith.mulf %79, %88 : vector<8x16x8xf32>
    %c0_110 = arith.constant 0 : index
    %c0_111 = arith.constant 0 : index
    %c1_112 = arith.constant 1 : index
    %c0_113 = arith.constant 0 : index
    %c0_114 = arith.constant 0 : index
    %90 = vector.load %arg7[%c0_110, %c0_111, %c1_112, %c0_113, %c0_114] : memref<1x8x2x16x8xf32, #tpu.memory_space<vmem>>, vector<1x8x1x16x8xf32>
    %91 = vector.shape_cast %90 : vector<1x8x1x16x8xf32> to vector<8x16x8xf32>
    %92 = vector.shape_cast %89 : vector<8x16x8xf32> to vector<1x8x1x16x8xf32>
    tpu.vector_store %arg7[%c0_110, %c0_111, %c1_112, %c0_113, %c0_114], %92 {strides = array<i32>} : memref<1x8x2x16x8xf32, #tpu.memory_space<vmem>>, vector<1x8x1x16x8xf32>,
    return
  }
  func.func @transform_0(%arg0: i32, %arg1: i32) -> (i32, i32, i32, i32) {
    %c0_i32 = arith.constant 0 : i32
    %c0_i32_0 = arith.constant 0 : i32
    %c0_i32_1 = arith.constant 0 : i32
    return %arg0, %arg1, %c0_i32, %c0_i32_0 : i32, i32, i32, i32
  }
  func.func @transform_1(%arg0: i32, %arg1: i32) -> (i32, i32, i32, i32) {
    %c8_i32 = arith.constant 8 : i32
    %0 = arith.muli %arg1, %c8_i32 : i32
    %c1_i32 = arith.constant 1 : i32
    %1 = arith.subi %0, %c1_i32 : i32
    %c0_i32 = arith.constant 0 : i32
    %2 = arith.maxsi %1, %c0_i32 : i32
    %c0_i32_0 = arith.constant 0 : i32
    %c0_i32_1 = arith.constant 0 : i32
    %c0_i32_2 = arith.constant 0 : i32
    return %arg0, %2, %c0_i32_0, %c0_i32_1 : i32, i32, i32, i32
  }
  func.func @transform_2(%arg0: i32, %arg1: i32) -> (i32, i32, i32, i32) {
    %c1_i32 = arith.constant 1 : i32
    %0 = arith.addi %arg1, %c1_i32 : i32
    %c8_i32 = arith.constant 8 : i32
    %1 = arith.muli %0, %c8_i32 : i32
    %c15_i32 = arith.constant 15 : i32
    %2 = arith.minsi %1, %c15_i32 : i32
    %c0_i32 = arith.constant 0 : i32
    %c0_i32_0 = arith.constant 0 : i32
    %c0_i32_1 = arith.constant 0 : i32
    return %arg0, %2, %c0_i32, %c0_i32_0 : i32, i32, i32, i32
  }
  func.func @transform_3(%arg0: i32, %arg1: i32) -> (i32, i32, i32, i32) {
    %c0_i32 = arith.constant 0 : i32
    %c0_i32_0 = arith.constant 0 : i32
    %c0_i32_1 = arith.constant 0 : i32
    %c0_i32_2 = arith.constant 0 : i32
    %c0_i32_3 = arith.constant 0 : i32
    return %c0_i32, %c0_i32_0, %c0_i32_1, %c0_i32_2 : i32, i32, i32, i32
  }
  func.func @transform_4(%arg0: i32, %arg1: i32) -> (i32, i32, i32) {
    %c0_i32 = arith.constant 0 : i32
    %c0_i32_0 = arith.constant 0 : i32
    %c0_i32_1 = arith.constant 0 : i32
    %c0_i32_2 = arith.constant 0 : i32
    return %c0_i32, %c0_i32_0, %c0_i32_1 : i32, i32, i32
  }
  func.func @transform_5(%arg0: i32, %arg1: i32) -> (i32, i32, i32, i32, i32) {
    %c0_i32 = arith.constant 0 : i32
    %c0_i32_0 = arith.constant 0 : i32
    %c0_i32_1 = arith.constant 0 : i32
    %c0_i32_2 = arith.constant 0 : i32
    return %arg0, %arg1, %c0_i32, %c0_i32_0, %c0_i32_1 : i32, i32, i32, i32, i32
  }
}

</mosaic_0001>

<llo_original>
// kernel: tpu_custom_call.1
$region0: #{tpu_custom_call.1}
  #allocation0 [shape = 'u32[]', space=smem, size = 0x4, offset = 0x4, fixed_abs, tag = 'smem constant byte address 0x4 - core index']
  #allocation1 [shape = 'u32[72,128]{1,0:T(1,128)}', space=vmem, size = 0x9000, scoped, tag = 'internal scratch']
  #allocation2 [shape = 'bf16[10,18,4]{2,1,0:T(8,128)(2,1)}', space=vmem, size = 0xf000, scoped, tag = 'scratch operand']
  %s0 = inlined_call_operand.vmem [shape: bf16[2,16,16,4], index: 0, kind: input, shape index: {}]
  %s1 = inlined_call_operand.vmem [shape: bf16[2,16,16,4], index: 1, kind: input, shape index: {}]
  %s2 = inlined_call_operand.vmem [shape: bf16[2,16,16,4], index: 2, kind: input, shape index: {}]
  %s3 = inlined_call_operand.vmem [shape: bf16[3,3,4,16], index: 3, kind: input, shape index: {}]
  %s4 = inlined_call_operand.vmem [shape: f32[1,1,16], index: 4, kind: input, shape index: {}]
  %s5 = inlined_call_operand.vmem [shape: f32[2,16,2,16,8], index: 5, kind: output, shape index: {}]
  %s6 = sld [smem:[#allocation0]]
  $region53: #{tpu_custom_call.1} parent=0
    _
  %s8 = ssub.s32 1, %s6
  %s9 = scalar_select 0, %s8, %s6
  loop: start=0, step=1, limit=6
  $region2: #{tpu_custom_call.1} parent=0 // loop_pre_header
    _
  $region3: #{tpu_custom_call.1} parent=0 // loop_header
    %s11 = sphi 0, %s15
    %p12 = scmp.ge.s32.totalorder %s11, 6
    %s18 = sphi 0, %s30
    %s19 = sphi 0, %s26
    %s20 = sphi 0, %s18
    %s21 = sphi 0, %s19
    %s22 = sphi 0, %s20
    %s23 = sphi 0, %s21
    %s35 = sphi 0, %s37
    %s38 = sphi 0, %s35
    %s39 = sphi 0, %s38
    %s55 = sphi 0, %s39
    %s71 = sphi 0, %s73
    %s74 = sphi 0, %s71
    %s75 = sphi 0, %s74
    %s91 = sphi 0, %s75
    %s107 = sphi 0, %s109
    %s110 = sphi 0, %s107
    %s111 = sphi 0, %s110
    %s127 = sphi 0, %s111
    %s131 = sphi 0, %s131
    %s133 = sphi 0, %s131
    %s134 = sphi 0, %s133
    %s148 = sphi 0, %s134
    %s152 = sphi 0, %s152
    %s154 = sphi 0, %s152
    %s155 = sphi 0, %s154
    %s169 = sphi 0, %s155
    %s177 = sphi 0, %s179
    %s180 = sphi 0, %s177
    %s181 = sphi 0, %s180
    %s197 = sphi 0, %s181
  $region4: #{tpu_custom_call.1} parent=0 // loop_header_branch
    %14 = sbr.rel (%p12) target = $region8
  $region5: #{tpu_custom_call.1} parent=0 // loop_body
    %s16 = ssub.s32 %s11, 1
    %s17 = ssub.s32 %s11, 2
    %s24 = sadd.s32 1, %s19
    %p25 = scmp.ge.s32.totalorder %s24, 2
    %s26 = scalar_select %p25, 0, %s24
    %s27 = sadd.s32 1, %s18
    %s28 = scalar_select %p25, %s27, %s18
    %p29 = scmp.ge.s32.totalorder %s28, 2
    %s30 = scalar_select %p29, 0, %s28
    %s31 = ssub.s32 %s18, %s30
    %s32 = ssub.s32 %s19, %s26
    %s33 = sor.u32 %s31, %s32
    %p34 = scmp.eq.s32.totalorder %s33, 0
    %s36 = sadd.s32 %s35, 1
    %s37 = scalar_select %p34, %s35, %s36
    %p40 = pneg %p34
    %p41 = scmp.eq.s32.totalorder %s11, 3
    %p42 = por %p40, %p41
    %p43 = scmp.ne.s32.totalorder %s35, %s38
    %p44 = scmp.eq.s32.totalorder %s11, 0
    %p45 = por %p43, %p44
    %p46 = scmp.ne.s32.totalorder %s35, %s38
    %p47 = scmp.eq.s32.totalorder %s16, 3
    %p48 = por %p46, %p47
    %p49 = scmp.ne.s32.totalorder %s38, %s39
    %p50 = scmp.eq.s32.totalorder %s16, 0
    %p51 = por %p49, %p50
    %p52 = scmp.ne.s32.totalorder %s38, %s39
    %p53 = scmp.eq.s32.totalorder %s17, 3
    %p54 = por %p52, %p53
    %p56 = scmp.ne.s32.totalorder %s39, %s55
    %p57 = scmp.eq.s32.totalorder %s17, 0
    %p58 = por %p56, %p57
    %s59 = smul.u32 %s19, 8
    %s60 = ssub.s32 %s59, 1
    %p61 = scmp.gt.s32.totalorder %s60, 0
    %s62 = scalar_select %p61, %s60, 0
    %s63 = smul.u32 %s26, 8
    %s64 = ssub.s32 %s63, 1
    %p65 = scmp.gt.s32.totalorder %s64, 0
    %s66 = scalar_select %p65, %s64, 0
    %s67 = ssub.s32 %s18, %s30
    %s68 = ssub.s32 %s62, %s66
    %s69 = sor.u32 %s67, %s68
    %p70 = scmp.eq.s32.totalorder %s69, 0
    %s72 = sadd.s32 %s71, 1
    %s73 = scalar_select %p70, %s71, %s72
    %p76 = pneg %p70
    %p77 = scmp.eq.s32.totalorder %s11, 3
    %p78 = por %p76, %p77
    %p79 = scmp.ne.s32.totalorder %s71, %s74
    %p80 = scmp.eq.s32.totalorder %s11, 0
    %p81 = por %p79, %p80
    %p82 = scmp.ne.s32.totalorder %s71, %s74
    %p83 = scmp.eq.s32.totalorder %s16, 3
    %p84 = por %p82, %p83
    %p85 = scmp.ne.s32.totalorder %s74, %s75
    %p86 = scmp.eq.s32.totalorder %s16, 0
    %p87 = por %p85, %p86
    %p88 = scmp.ne.s32.totalorder %s74, %s75
    %p89 = scmp.eq.s32.totalorder %s17, 3
    %p90 = por %p88, %p89
    %p92 = scmp.ne.s32.totalorder %s75, %s91
    %p93 = scmp.eq.s32.totalorder %s17, 0
    %p94 = por %p92, %p93
    %s95 = sadd.s32 %s19, 1
    %s96 = smul.u32 %s95, 8
    %p97 = scmp.lt.s32.totalorder %s96, 15
    %s98 = scalar_select %p97, %s96, 15
    %s99 = sadd.s32 %s26, 1
    %s100 = smul.u32 %s99, 8
    %p101 = scmp.lt.s32.totalorder %s100, 15
    %s102 = scalar_select %p101, %s100, 15
    %s103 = ssub.s32 %s18, %s30
    %s104 = ssub.s32 %s98, %s102
    %s105 = sor.u32 %s103, %s104
    %p106 = scmp.eq.s32.totalorder %s105, 0
    %s108 = sadd.s32 %s107, 1
    %s109 = scalar_select %p106, %s107, %s108
    %p112 = pneg %p106
    %p113 = scmp.eq.s32.totalorder %s11, 3
    %p114 = por %p112, %p113
    %p115 = scmp.ne.s32.totalorder %s107, %s110
    %p116 = scmp.eq.s32.totalorder %s11, 0
    %p117 = por %p115, %p116
    %p118 = scmp.ne.s32.totalorder %s107, %s110
    %p119 = scmp.eq.s32.totalorder %s16, 3
    %p120 = por %p118, %p119
    %p121 = scmp.ne.s32.totalorder %s110, %s111
    %p122 = scmp.eq.s32.totalorder %s16, 0
    %p123 = por %p121, %p122
    %p124 = scmp.ne.s32.totalorder %s110, %s111
    %p125 = scmp.eq.s32.totalorder %s17, 3
    %p126 = por %p124, %p125
    %p128 = scmp.ne.s32.totalorder %s111, %s127
    %p129 = scmp.eq.s32.totalorder %s17, 0
    %p130 = por %p128, %p129
    %s132 = sadd.s32 %s131, 1
    %p135 = scmp.eq.s32.totalorder %s11, 3
    %p136 = scmp.ne.s32.totalorder %s131, %s133
    %p137 = scmp.eq.s32.totalorder %s11, 0
    %p138 = por %p136, %p137
    %p139 = scmp.ne.s32.totalorder %s131, %s133
    %p140 = scmp.eq.s32.totalorder %s16, 3
    %p141 = por %p139, %p140
    %p142 = scmp.ne.s32.totalorder %s133, %s134
    %p143 = scmp.eq.s32.totalorder %s16, 0
    %p144 = por %p142, %p143
    %p145 = scmp.ne.s32.totalorder %s133, %s134
    %p146 = scmp.eq.s32.totalorder %s17, 3
    %p147 = por %p145, %p146
    %p149 = scmp.ne.s32.totalorder %s134, %s148
    %p150 = scmp.eq.s32.totalorder %s17, 0
    %p151 = por %p149, %p150
    %s153 = sadd.s32 %s152, 1
    %p156 = scmp.eq.s32.totalorder %s11, 3
    %p157 = scmp.ne.s32.totalorder %s152, %s154
    %p158 = scmp.eq.s32.totalorder %s11, 0
    %p159 = por %p157, %p158
    %p160 = scmp.ne.s32.totalorder %s152, %s154
    %p161 = scmp.eq.s32.totalorder %s16, 3
    %p162 = por %p160, %p161
    %p163 = scmp.ne.s32.totalorder %s154, %s155
    %p164 = scmp.eq.s32.totalorder %s16, 0
    %p165 = por %p163, %p164
    %p166 = scmp.ne.s32.totalorder %s154, %s155
    %p167 = scmp.eq.s32.totalorder %s17, 3
    %p168 = por %p166, %p167
    %p170 = scmp.ne.s32.totalorder %s155, %s169
    %p171 = scmp.eq.s32.totalorder %s17, 0
    %p172 = por %p170, %p171
    %s173 = ssub.s32 %s18, %s30
    %s174 = ssub.s32 %s19, %s26
    %s175 = sor.u32 %s173, %s174
    %p176 = scmp.eq.s32.totalorder %s175, 0
    %s178 = sadd.s32 %s177, 1
    %s179 = scalar_select %p176, %s177, %s178
    %p182 = pneg %p176
    %p183 = scmp.eq.s32.totalorder %s11, 3
    %p184 = por %p182, %p183
    %p185 = scmp.ne.s32.totalorder %s177, %s180
    %p186 = scmp.eq.s32.totalorder %s11, 0
    %p187 = por %p185, %p186
    %p188 = scmp.ne.s32.totalorder %s177, %s180
    %p189 = scmp.eq.s32.totalorder %s16, 3
    %p190 = por %p188, %p189
    %p191 = scmp.ne.s32.totalorder %s180, %s181
    %p192 = scmp.eq.s32.totalorder %s16, 0
    %p193 = por %p191, %p192
    %p194 = scmp.ne.s32.totalorder %s180, %s181
    %p195 = scmp.eq.s32.totalorder %s17, 3
    %p196 = por %p194, %p195
    %p198 = scmp.ne.s32.totalorder %s181, %s197
    %p199 = scmp.eq.s32.totalorder %s17, 0
    %p200 = por %p198, %p199
    %p201 = scmp.le.s32.totalorder 1, %s11
    %p202 = scmp.lt.s32.totalorder %s11, 5
    %p203 = pnand %p201, %p202
    %p204 = pneg %p203
    // Predicated region
    $region9: #{tpu_custom_call.1} parent=5 // pred_check
      _
    $region10: #{tpu_custom_call.1} parent=5 // pred_check_branch
      %206 = sbr.rel (%p203) target = $region12
    $region11: #{tpu_custom_call.1} parent=5 // pred_region
      %s207 = ssub.s32 %s11, 1
      // Predicated region
      $region13: #{tpu_custom_call.1} parent=11 // pred_check
        %p208 = pneg %p144
      $region14: #{tpu_custom_call.1} parent=11 // pred_check_branch
        %210 = sbr.rel (%p208) target = $region16
      $region15: #{tpu_custom_call.1} parent=11 // pred_region
        _
      $region16: #{tpu_custom_call.1} parent=11 // pred_fallthru
        _
      // Predicated region
      $region17: #{tpu_custom_call.1} parent=11 // pred_check
        %p211 = pneg %p165
      $region18: #{tpu_custom_call.1} parent=11 // pred_check_branch
        %213 = sbr.rel (%p211) target = $region20
      $region19: #{tpu_custom_call.1} parent=11 // pred_region
        _
      $region20: #{tpu_custom_call.1} parent=11 // pred_fallthru
        _
    $region12: #{tpu_custom_call.1} parent=5 // pred_fallthru
      _
    %p214 = scmp.lt.s32.totalorder %s11, 4
    // Predicated region
    $region21: #{tpu_custom_call.1} parent=5 // pred_check
      %p215 = pneg %p214
    $region22: #{tpu_custom_call.1} parent=5 // pred_check_branch
      %217 = sbr.rel (%p215) target = $region24
    $region23: #{tpu_custom_call.1} parent=5 // pred_region
      // Predicated region
      $region25: #{tpu_custom_call.1} parent=23 // pred_check
        %p218 = pneg %p45
      $region26: #{tpu_custom_call.1} parent=23 // pred_check_branch
        %220 = sbr.rel (%p218) target = $region28
      $region27: #{tpu_custom_call.1} parent=23 // pred_region
        %s221 = smul.u32 8, %s19
        %p222 = scmp.lt.s32.totalorder %s18, 1
        %s223 = scalar_select %p222, %s18, 1
        %p224 = scmp.lt.s32.totalorder %s221, 15
        %s225 = scalar_select %p224, %s221, 15
        %s226 = smul.addr %s225, 2
        %s227 = smul.addr %s223, 32
        %s228 = sadd.s32 %s226, %s227
        %s229 = smul.addr %s228, 4
        %s230 = scalar_lea.vmem %s0, %s229
        %s231 = smul.u32 8, %s19
      $region28: #{tpu_custom_call.1} parent=23 // pred_fallthru
        _
      // Predicated region
      $region29: #{tpu_custom_call.1} parent=23 // pred_check
        %p232 = pneg %p81
      $region30: #{tpu_custom_call.1} parent=23 // pred_check_branch
        %234 = sbr.rel (%p232) target = $region32
      $region31: #{tpu_custom_call.1} parent=23 // pred_region
        %s235 = smul.u32 %s19, 8
        %s236 = ssub.s32 %s235, 1
        %p237 = scmp.gt.s32.totalorder %s236, 0
        %s238 = scalar_select %p237, %s236, 0
        %p239 = scmp.lt.s32.totalorder %s18, 1
        %s240 = scalar_select %p239, %s18, 1
        %p241 = scmp.lt.s32.totalorder %s238, 15
        %s242 = scalar_select %p241, %s238, 15
        %s243 = smul.addr %s242, 2
        %s244 = smul.addr %s240, 32
        %s245 = sadd.s32 %s243, %s244
        %s246 = smul.addr %s245, 4
        %s247 = scalar_lea.vmem %s1, %s246
        %s248 = smul.u32 %s19, 8
        %s249 = ssub.s32 %s248, 1
        %p250 = scmp.gt.s32.totalorder %s249, 0
        %s251 = scalar_select %p250, %s249, 0
      $region32: #{tpu_custom_call.1} parent=23 // pred_fallthru
        _
      // Predicated region
      $region33: #{tpu_custom_call.1} parent=23 // pred_check
        %p252 = pneg %p117
      $region34: #{tpu_custom_call.1} parent=23 // pred_check_branch
        %254 = sbr.rel (%p252) target = $region36
      $region35: #{tpu_custom_call.1} parent=23 // pred_region
        %s255 = sadd.s32 %s19, 1
        %s256 = smul.u32 %s255, 8
        %p257 = scmp.lt.s32.totalorder %s256, 15
        %s258 = scalar_select %p257, %s256, 15
        %p259 = scmp.lt.s32.totalorder %s18, 1
        %s260 = scalar_select %p259, %s18, 1
        %p261 = scmp.lt.s32.totalorder %s258, 15
        %s262 = scalar_select %p261, %s258, 15
        %s263 = smul.addr %s262, 2
        %s264 = smul.addr %s260, 32
        %s265 = sadd.s32 %s263, %s264
        %s266 = smul.addr %s265, 4
        %s267 = scalar_lea.vmem %s2, %s266
        %s268 = sadd.s32 %s19, 1
        %s269 = smul.u32 %s268, 8
        %p270 = scmp.lt.s32.totalorder %s269, 15
        %s271 = scalar_select %p270, %s269, 15
      $region36: #{tpu_custom_call.1} parent=23 // pred_fallthru
        _
    $region24: #{tpu_custom_call.1} parent=5 // pred_fallthru
      _
    %p272 = scmp.le.s32.totalorder 1, %s11
    %p273 = scmp.lt.s32.totalorder %s11, 5
    %p274 = pnand %p272, %p273
    %p275 = pneg %p274
    // Predicated region
    $region37: #{tpu_custom_call.1} parent=5 // pred_check
      _
    $region38: #{tpu_custom_call.1} parent=5 // pred_check_branch
      %277 = sbr.rel (%p274) target = $region40
    $region39: #{tpu_custom_call.1} parent=5 // pred_region
      %s278 = ssub.s32 %s11, 1
      %s279 = smul.u32 8, %s21
      %p280 = scmp.lt.s32.totalorder %s20, 1
      %s281 = scalar_select %p280, %s20, 1
      %p282 = scmp.lt.s32.totalorder %s279, 15
      %s283 = scalar_select %p282, %s279, 15
      %s284 = smul.addr %s283, 2
      %s285 = smul.addr %s281, 32
      %s286 = sadd.s32 %s284, %s285
      %s287 = smul.addr %s286, 4
      %s288 = scalar_lea.vmem %s0, %s287
      %p289 = pneg %p51
      %p290 = pneg %p48
      %s291 = smul.u32 %s21, 8
      %s292 = ssub.s32 %s291, 1
      %p293 = scmp.gt.s32.totalorder %s292, 0
      %s294 = scalar_select %p293, %s292, 0
      %p295 = scmp.lt.s32.totalorder %s20, 1
      %s296 = scalar_select %p295, %s20, 1
      %p297 = scmp.lt.s32.totalorder %s294, 15
      %s298 = scalar_select %p297, %s294, 15
      %s299 = smul.addr %s298, 2
      %s300 = smul.addr %s296, 32
      %s301 = sadd.s32 %s299, %s300
      %s302 = smul.addr %s301, 4
      %s303 = scalar_lea.vmem %s1, %s302
      %p304 = pneg %p87
      %p305 = pneg %p84
      %s306 = sadd.s32 %s21, 1
      %s307 = smul.u32 %s306, 8
      %p308 = scmp.lt.s32.totalorder %s307, 15
      %s309 = scalar_select %p308, %s307, 15
      %p310 = scmp.lt.s32.totalorder %s20, 1
      %s311 = scalar_select %p310, %s20, 1
      %p312 = scmp.lt.s32.totalorder %s309, 15
      %s313 = scalar_select %p312, %s309, 15
      %s314 = smul.addr %s313, 2
      %s315 = smul.addr %s311, 32
      %s316 = sadd.s32 %s314, %s315
      %s317 = smul.addr %s316, 4
      %s318 = scalar_lea.vmem %s2, %s317
      %p319 = pneg %p123
      %p320 = pneg %p120
      %p321 = pneg %p144
      %p322 = pneg %p141
      %p323 = pneg %p165
      %p324 = pneg %p162
      %p325 = pneg %p193
      %p326 = pneg %p190
      %s327 = smul.u32 8, %s21
      %p328 = scmp.lt.s32.totalorder %s20, 1
      %s329 = scalar_select %p328, %s20, 1
      %p330 = scmp.lt.s32.totalorder %s327, 15
      %s331 = scalar_select %p330, %s327, 15
      %s332 = smul.addr %s331, 4
      %s333 = smul.addr %s329, 64
      %s334 = sadd.s32 %s332, %s333
      %s335 = smul.addr %s334, 8
      %s336 = scalar_lea.vmem %s5, %s335
      %s337 = smul.u32 8, %s21
      %p338 = scmp.lt.s32.totalorder %s20, 1
      %s339 = scalar_select %p338, %s20, 1
      %p340 = scmp.lt.s32.totalorder %s337, 15
      %s341 = scalar_select %p340, %s337, 15
      %s342 = smul.addr %s341, 2
      %s343 = smul.addr %s339, 32
      %s344 = sadd.s32 %s342, %s343
      %s345 = smul.addr %s344, 4
      %s346 = scalar_lea.vmem %s0, %s345
      %s347 = smul.u32 8, %s21
      %s348 = smul.u32 %s21, 8
      %s349 = ssub.s32 %s348, 1
      %p350 = scmp.gt.s32.totalorder %s349, 0
      %s351 = scalar_select %p350, %s349, 0
      %p352 = scmp.lt.s32.totalorder %s20, 1
      %s353 = scalar_select %p352, %s20, 1
      %p354 = scmp.lt.s32.totalorder %s351, 15
      %s355 = scalar_select %p354, %s351, 15
      %s356 = smul.addr %s355, 2
      %s357 = smul.addr %s353, 32
      %s358 = sadd.s32 %s356, %s357
      %s359 = smul.addr %s358, 4
      %s360 = scalar_lea.vmem %s1, %s359
      %s361 = smul.u32 %s21, 8
      %s362 = ssub.s32 %s361, 1
      %p363 = scmp.gt.s32.totalorder %s362, 0
      %s364 = scalar_select %p363, %s362, 0
      %s365 = sadd.s32 %s21, 1
      %s366 = smul.u32 %s365, 8
      %p367 = scmp.lt.s32.totalorder %s366, 15
      %s368 = scalar_select %p367, %s366, 15
      %p369 = scmp.lt.s32.totalorder %s20, 1
      %s370 = scalar_select %p369, %s20, 1
      %p371 = scmp.lt.s32.totalorder %s368, 15
      %s372 = scalar_select %p371, %s368, 15
      %s373 = smul.addr %s372, 2
      %s374 = smul.addr %s370, 32
      %s375 = sadd.s32 %s373, %s374
      %s376 = smul.addr %s375, 4
      %s377 = scalar_lea.vmem %s2, %s376
      %s378 = sadd.s32 %s21, 1
      %s379 = smul.u32 %s378, 8
      %p380 = scmp.lt.s32.totalorder %s379, 15
      %s381 = scalar_select %p380, %s379, 15
      %s382 = smul.u32 8, %s21
      %p383 = scmp.lt.s32.totalorder %s20, 1
      %s384 = scalar_select %p383, %s20, 1
      %p385 = scmp.lt.s32.totalorder %s382, 15
      %s386 = scalar_select %p385, %s382, 15
      %s387 = smul.addr %s386, 4
      %s388 = smul.addr %s384, 64
      %s389 = sadd.s32 %s387, %s388
      %s390 = smul.addr %s389, 8
      %s391 = scalar_lea.vmem %s5, %s390
      %s392 = smul.u32 8, %s21
      %v394 = vld [vmem:[%s346] sm:$0xf]
      %v395 = vld [vmem:[%s346 + $0x4] sm:$0xf]
      %v396 = vld [vmem:[%s346 + $0x8] sm:$0xf]
      %v397 = vld [vmem:[%s346 + $0xc] sm:$0xf]
      %v398 = vld [vmem:[%s346 + $0x10] sm:$0xf]
      %v399 = vld [vmem:[%s346 + $0x14] sm:$0xf]
      %v400 = vld [vmem:[%s346 + $0x18] sm:$0xf]
      %v401 = vld [vmem:[%s346 + $0x1c] sm:$0xf]
      %v402 = vld [vmem:[%s346 + $0x20] sm:$0xf]
      %v403 = vld [vmem:[%s346 + $0x24] sm:$0xf]
      %v404 = vld [vmem:[%s346 + $0x28] sm:$0xf]
      %v405 = vld [vmem:[%s346 + $0x2c] sm:$0xf]
      %v406 = vld [vmem:[%s346 + $0x30] sm:$0xf]
      %v407 = vld [vmem:[%s346 + $0x34] sm:$0xf]
      %v408 = vld [vmem:[%s346 + $0x38] sm:$0xf]
      %v409 = vld [vmem:[%s346 + $0x3c] sm:$0xf]
      %v410 = vld [vmem:[%s360] sm:$0xf]
      %v411 = vld [vmem:[%s360 + $0x4] sm:$0xf]
      %v412 = vld [vmem:[%s377] sm:$0xf]
      %v413 = vld [vmem:[%s377 + $0x4] sm:$0xf]
      %p414 = scmp.eq.s32.totalorder %s21, 0
      %s415 = scalar_select %p414, 1, 0
      %v416 = vstv %s415
      %vm417 = vcmp.eq.s32.totalorder %v416, 1
      %v418 = vsel %vm417, 0, %v410
      %v419 = vsel %vm417, 0, %v411
      %p420 = scmp.eq.s32.totalorder %s21, 1
      %s421 = scalar_select %p420, 1, 0
      %v422 = vstv %s421
      %vm423 = vcmp.eq.s32.totalorder %v422, 1
      %v424 = vsel %vm423, 0, %v412
      %v425 = vsel %vm423, 0, %v413
      %vm426 = vcmask 24576
      %vm427 = vsmask.f32 256
      %vm428 = vmand %vm426, %vm427
      %v429 = vld [vmem:[#allocation2] sm:$0x1]
      %v430 = vsel %vm428, 0, %v429
      %431 = vst [vmem:[#allocation2] sm:$0x1] %v430
      %v432 = vld [vmem:[#allocation2 + $0xc] sm:$0x1]
      %v433 = vsel %vm428, 0, %v432
      %434 = vst [vmem:[#allocation2 + $0xc] sm:$0x1] %v433
      %v435 = vld [vmem:[#allocation2 + $0x18] sm:$0x1]
      %v436 = vsel %vm428, 0, %v435
      %437 = vst [vmem:[#allocation2 + $0x18] sm:$0x1] %v436
      %v438 = vld [vmem:[#allocation2 + $0x24] sm:$0x1]
      %v439 = vsel %vm428, 0, %v438
      %440 = vst [vmem:[#allocation2 + $0x24] sm:$0x1] %v439
      %v441 = vld [vmem:[#allocation2 + $0x30] sm:$0x1]
      %v442 = vsel %vm428, 0, %v441
      %443 = vst [vmem:[#allocation2 + $0x30] sm:$0x1] %v442
      %v444 = vld [vmem:[#allocation2 + $0x3c] sm:$0x1]
      %v445 = vsel %vm428, 0, %v444
      %446 = vst [vmem:[#allocation2 + $0x3c] sm:$0x1] %v445
      %v447 = vld [vmem:[#allocation2 + $0x48] sm:$0x1]
      %v448 = vsel %vm428, 0, %v447
      %449 = vst [vmem:[#allocation2 + $0x48] sm:$0x1] %v448
      %v450 = vld [vmem:[#allocation2 + $0x54] sm:$0x1]
      %v451 = vsel %vm428, 0, %v450
      %452 = vst [vmem:[#allocation2 + $0x54] sm:$0x1] %v451
      %v453 = vld [vmem:[#allocation2 + $0x60] sm:$0x1]
      %v454 = vsel %vm428, 0, %v453
      %455 = vst [vmem:[#allocation2 + $0x60] sm:$0x1] %v454
      %v456 = vld [vmem:[#allocation2 + $0x6c] sm:$0x1]
      %v457 = vsel %vm428, 0, %v456
      %458 = vst [vmem:[#allocation2 + $0x6c] sm:$0x1] %v457
      %vm459 = vsmask.f32 7938
      %vm460 = vmand %vm426, %vm459
      %v461 = vld [vmem:[#allocation2 + $0x8] sm:$0x1]
      %v462 = vsel %vm460, 0, %v461
      %463 = vst [vmem:[#allocation2 + $0x8] sm:$0x1] %v462
      %v464 = vld [vmem:[#allocation2 + $0x14] sm:$0x1]
      %v465 = vsel %vm460, 0, %v464
      %466 = vst [vmem:[#allocation2 + $0x14] sm:$0x1] %v465
      %v467 = vld [vmem:[#allocation2 + $0x20] sm:$0x1]
      %v468 = vsel %vm460, 0, %v467
      %469 = vst [vmem:[#allocation2 + $0x20] sm:$0x1] %v468
      %v470 = vld [vmem:[#allocation2 + $0x2c] sm:$0x1]
      %v471 = vsel %vm460, 0, %v470
      %472 = vst [vmem:[#allocation2 + $0x2c] sm:$0x1] %v471
      %v473 = vld [vmem:[#allocation2 + $0x38] sm:$0x1]
      %v474 = vsel %vm460, 0, %v473
      %475 = vst [vmem:[#allocation2 + $0x38] sm:$0x1] %v474
      %v476 = vld [vmem:[#allocation2 + $0x44] sm:$0x1]
      %v477 = vsel %vm460, 0, %v476
      %478 = vst [vmem:[#allocation2 + $0x44] sm:$0x1] %v477
      %v479 = vld [vmem:[#allocation2 + $0x50] sm:$0x1]
      %v480 = vsel %vm460, 0, %v479
      %481 = vst [vmem:[#allocation2 + $0x50] sm:$0x1] %v480
      %v482 = vld [vmem:[#allocation2 + $0x5c] sm:$0x1]
      %v483 = vsel %vm460, 0, %v482
      %484 = vst [vmem:[#allocation2 + $0x5c] sm:$0x1] %v483
      %v485 = vld [vmem:[#allocation2 + $0x68] sm:$0x1]
      %v486 = vsel %vm460, 0, %v485
      %487 = vst [vmem:[#allocation2 + $0x68] sm:$0x1] %v486
      %v488 = vld [vmem:[#allocation2 + $0x74] sm:$0x1]
      %v489 = vsel %vm460, 0, %v488
      %490 = vst [vmem:[#allocation2 + $0x74] sm:$0x1] %v489
      %vm491 = vsmask.f32 4368
      %vm492 = vmor %vm427, %vm491
      %v494 = vshrl.u32 %v418, 16
      %v496 = vrot.slane %v494, 7
      %v497 = vshll.u32 %v418, 16
      %v499 = vor.u32 %v496, %v497
      %v500 = vrot.slane %v496, 4
      %v502 = vshrl.u32 %v419, 16
      %v504 = vrot.slane %v502, 7
      %v505 = vshll.u32 %v419, 16
      %v507 = vor.u32 %v504, %v505
      %v508 = vsel %vm492, %v500, %v507
      %v509 = vrot.slane %v504, 4
      %vm513 = vcmask 27648
      %vm514 = vmand %vm513, %vm459
      %v515 = vld [vmem:[#allocation2] sm:$0xf]
      %v516 = vsel %vm514, %v499, %v515
      %517 = vst [vmem:[#allocation2] sm:$0xf] %v516
      %vm518 = vcmask 27648
      %519 = vst.msk [vmem:[#allocation2 + $0x4] sm:$0xf] %vm518, %v508
      %v520 = vld [vmem:[#allocation2 + $0x8] sm:$0x1]
      %v521 = vsel %vm428, %v509, %v520
      %522 = vst [vmem:[#allocation2 + $0x8] sm:$0x1] %v521
      %v524 = vshrl.u32 %v424, 16
      %v526 = vrot.slane %v524, 7
      %v527 = vshll.u32 %v424, 16
      %v529 = vor.u32 %v526, %v527
      %v530 = vrot.slane %v526, 4
      %v532 = vshrl.u32 %v425, 16
      %v534 = vrot.slane %v532, 7
      %v535 = vshll.u32 %v425, 16
      %v537 = vor.u32 %v534, %v535
      %v538 = vsel %vm492, %v530, %v537
      %v539 = vrot.slane %v534, 4
      %s543 = scalar_lea.vmem [#allocation2], 108
      %v544 = vld [vmem:[%s543] sm:$0xf]
      %v545 = vsel %vm514, %v529, %v544
      %546 = vst [vmem:[%s543] sm:$0xf] %v545
      %547 = vst.msk [vmem:[%s543 + $0x4] sm:$0xf] %vm518, %v538
      %v548 = vld [vmem:[%s543 + $0x8] sm:$0x1]
      %v549 = vsel %vm428, %v539, %v548
      %550 = vst [vmem:[%s543 + $0x8] sm:$0x1] %v549
      %v552 = vshrl.u32 %v394, 16
      %v554 = vrot.slane %v552, 7
      %v555 = vshll.u32 %v394, 16
      %v557 = vor.u32 %v554, %v555
      %v558 = vrot.slane %v554, 4
      %v560 = vshrl.u32 %v395, 16
      %v562 = vrot.slane %v560, 7
      %v563 = vshll.u32 %v395, 16
      %v565 = vor.u32 %v562, %v563
      %v566 = vsel %vm492, %v558, %v565
      %v567 = vrot.slane %v562, 4
      %v569 = vshrl.u32 %v396, 16
      %v571 = vrot.slane %v569, 7
      %v572 = vshll.u32 %v396, 16
      %v574 = vor.u32 %v571, %v572
      %v575 = vrot.slane %v571, 4
      %v577 = vshrl.u32 %v397, 16
      %v579 = vrot.slane %v577, 7
      %v580 = vshll.u32 %v397, 16
      %v582 = vor.u32 %v579, %v580
      %v583 = vsel %vm492, %v575, %v582
      %v584 = vrot.slane %v579, 4
      %v586 = vshrl.u32 %v398, 16
      %v588 = vrot.slane %v586, 7
      %v589 = vshll.u32 %v398, 16
      %v591 = vor.u32 %v588, %v589
      %v592 = vrot.slane %v588, 4
      %v594 = vshrl.u32 %v399, 16
      %v596 = vrot.slane %v594, 7
      %v597 = vshll.u32 %v399, 16
      %v599 = vor.u32 %v596, %v597
      %v600 = vsel %vm492, %v592, %v599
      %v601 = vrot.slane %v596, 4
      %v603 = vshrl.u32 %v400, 16
      %v605 = vrot.slane %v603, 7
      %v606 = vshll.u32 %v400, 16
      %v608 = vor.u32 %v605, %v606
      %v609 = vrot.slane %v605, 4
      %v611 = vshrl.u32 %v401, 16
      %v613 = vrot.slane %v611, 7
      %v614 = vshll.u32 %v401, 16
      %v616 = vor.u32 %v613, %v614
      %v617 = vsel %vm492, %v609, %v616
      %v618 = vrot.slane %v613, 4
      %v620 = vshrl.u32 %v402, 16
      %v622 = vrot.slane %v620, 7
      %v623 = vshll.u32 %v402, 16
      %v625 = vor.u32 %v622, %v623
      %v626 = vrot.slane %v622, 4
      %v628 = vshrl.u32 %v403, 16
      %v630 = vrot.slane %v628, 7
      %v631 = vshll.u32 %v403, 16
      %v633 = vor.u32 %v630, %v631
      %v634 = vsel %vm492, %v626, %v633
      %v635 = vrot.slane %v630, 4
      %v637 = vshrl.u32 %v404, 16
      %v639 = vrot.slane %v637, 7
      %v640 = vshll.u32 %v404, 16
      %v642 = vor.u32 %v639, %v640
      %v643 = vrot.slane %v639, 4
      %v645 = vshrl.u32 %v405, 16
      %v647 = vrot.slane %v645, 7
      %v648 = vshll.u32 %v405, 16
      %v650 = vor.u32 %v647, %v648
      %v651 = vsel %vm492, %v643, %v650
      %v652 = vrot.slane %v647, 4
      %v654 = vshrl.u32 %v406, 16
      %v656 = vrot.slane %v654, 7
      %v657 = vshll.u32 %v406, 16
      %v659 = vor.u32 %v656, %v657
      %v660 = vrot.slane %v656, 4
      %v662 = vshrl.u32 %v407, 16
      %v664 = vrot.slane %v662, 7
      %v665 = vshll.u32 %v407, 16
      %v667 = vor.u32 %v664, %v665
      %v668 = vsel %vm492, %v660, %v667
      %v669 = vrot.slane %v664, 4
      %v671 = vshrl.u32 %v408, 16
      %v673 = vrot.slane %v671, 7
      %v674 = vshll.u32 %v408, 16
      %v676 = vor.u32 %v673, %v674
      %v677 = vrot.slane %v673, 4
      %v679 = vshrl.u32 %v409, 16
      %v681 = vrot.slane %v679, 7
      %v682 = vshll.u32 %v409, 16
      %v684 = vor.u32 %v681, %v682
      %v685 = vsel %vm492, %v677, %v684
      %v686 = vrot.slane %v681, 4
      %s711 = scalar_lea.vmem [#allocation2], 12
      %v712 = vld [vmem:[%s711] sm:$0xf]
      %v713 = vsel %vm514, %v557, %v712
      %714 = vst [vmem:[%s711] sm:$0xf] %v713
      %715 = vst.msk [vmem:[%s711 + $0x4] sm:$0xf] %vm518, %v566
      %v716 = vld [vmem:[%s711 + $0x8] sm:$0x1]
      %v717 = vsel %vm428, %v567, %v716
      %718 = vst [vmem:[%s711 + $0x8] sm:$0x1] %v717
      %v719 = vld [vmem:[%s711 + $0xc] sm:$0xf]
      %v720 = vsel %vm514, %v574, %v719
      %721 = vst [vmem:[%s711 + $0xc] sm:$0xf] %v720
      %722 = vst.msk [vmem:[%s711 + $0x10] sm:$0xf] %vm518, %v583
      %v723 = vld [vmem:[%s711 + $0x14] sm:$0x1]
      %v724 = vsel %vm428, %v584, %v723
      %725 = vst [vmem:[%s711 + $0x14] sm:$0x1] %v724
      %v726 = vld [vmem:[%s711 + $0x18] sm:$0xf]
      %v727 = vsel %vm514, %v591, %v726
      %728 = vst [vmem:[%s711 + $0x18] sm:$0xf] %v727
      %729 = vst.msk [vmem:[%s711 + $0x1c] sm:$0xf] %vm518, %v600
      %v730 = vld [vmem:[%s711 + $0x20] sm:$0x1]
      %v731 = vsel %vm428, %v601, %v730
      %732 = vst [vmem:[%s711 + $0x20] sm:$0x1] %v731
      %v733 = vld [vmem:[%s711 + $0x24] sm:$0xf]
      %v734 = vsel %vm514, %v608, %v733
      %735 = vst [vmem:[%s711 + $0x24] sm:$0xf] %v734
      %736 = vst.msk [vmem:[%s711 + $0x28] sm:$0xf] %vm518, %v617
      %v737 = vld [vmem:[%s711 + $0x2c] sm:$0x1]
      %v738 = vsel %vm428, %v618, %v737
      %739 = vst [vmem:[%s711 + $0x2c] sm:$0x1] %v738
      %v740 = vld [vmem:[%s711 + $0x30] sm:$0xf]
      %v741 = vsel %vm514, %v625, %v740
      %742 = vst [vmem:[%s711 + $0x30] sm:$0xf] %v741
      %743 = vst.msk [vmem:[%s711 + $0x34] sm:$0xf] %vm518, %v634
      %v744 = vld [vmem:[%s711 + $0x38] sm:$0x1]
      %v745 = vsel %vm428, %v635, %v744
      %746 = vst [vmem:[%s711 + $0x38] sm:$0x1] %v745
      %v747 = vld [vmem:[%s711 + $0x3c] sm:$0xf]
      %v748 = vsel %vm514, %v642, %v747
      %749 = vst [vmem:[%s711 + $0x3c] sm:$0xf] %v748
      %750 = vst.msk [vmem:[%s711 + $0x40] sm:$0xf] %vm518, %v651
      %v751 = vld [vmem:[%s711 + $0x44] sm:$0x1]
      %v752 = vsel %vm428, %v652, %v751
      %753 = vst [vmem:[%s711 + $0x44] sm:$0x1] %v752
      %v754 = vld [vmem:[%s711 + $0x48] sm:$0xf]
      %v755 = vsel %vm514, %v659, %v754
      %756 = vst [vmem:[%s711 + $0x48] sm:$0xf] %v755
      %757 = vst.msk [vmem:[%s711 + $0x4c] sm:$0xf] %vm518, %v668
      %v758 = vld [vmem:[%s711 + $0x50] sm:$0x1]
      %v759 = vsel %vm428, %v669, %v758
      %760 = vst [vmem:[%s711 + $0x50] sm:$0x1] %v759
      %v761 = vld [vmem:[%s711 + $0x54] sm:$0xf]
      %v762 = vsel %vm514, %v676, %v761
      %763 = vst [vmem:[%s711 + $0x54] sm:$0xf] %v762
      %764 = vst.msk [vmem:[%s711 + $0x58] sm:$0xf] %vm518, %v685
      %v765 = vld [vmem:[%s711 + $0x5c] sm:$0x1]
      %v766 = vsel %vm428, %v686, %v765
      %767 = vst [vmem:[%s711 + $0x5c] sm:$0x1] %v766
      %v768 = vld [vmem:[#allocation2] sm:$0xf]
      %v769 = vld [vmem:[#allocation2 + $0x4] sm:$0xf]
      %v770 = vld [vmem:[#allocation2 + $0xc] sm:$0xf]
      %v771 = vld [vmem:[#allocation2 + $0x10] sm:$0xf]
      %v772 = vld [vmem:[#allocation2 + $0x18] sm:$0xf]
      %v773 = vld [vmem:[#allocation2 + $0x1c] sm:$0xf]
      %v774 = vld [vmem:[#allocation2 + $0x24] sm:$0xf]
      %v775 = vld [vmem:[#allocation2 + $0x28] sm:$0xf]
      %v776 = vld [vmem:[#allocation2 + $0x30] sm:$0xf]
      %v777 = vld [vmem:[#allocation2 + $0x34] sm:$0xf]
      %v778 = vld [vmem:[#allocation2 + $0x3c] sm:$0xf]
      %v779 = vld [vmem:[#allocation2 + $0x40] sm:$0xf]
      %v780 = vld [vmem:[#allocation2 + $0x48] sm:$0xf]
      %v781 = vld [vmem:[#allocation2 + $0x4c] sm:$0xf]
      %v782 = vld [vmem:[#allocation2 + $0x54] sm:$0xf]
      %v783 = vld [vmem:[#allocation2 + $0x58] sm:$0xf]
      %v784 = vld [vmem:[%s3] sm:$0x3]
      %v785 = vld [vmem:[%s4] sm:$0x1]
      %v787 = vperm.slane %v785, 0
      %v805 = vunpack.c.l.b16 %v768
      %v806 = vunpack.c.l.b16 %v769
      %v807 = vunpack.c.l.b16 %v770
      %v808 = vunpack.c.l.b16 %v771
      %v809 = vunpack.c.l.b16 %v772
      %v810 = vunpack.c.l.b16 %v773
      %v811 = vunpack.c.l.b16 %v774
      %v812 = vunpack.c.l.b16 %v775
      %v813 = vunpack.c.l.b16 %v776
      %v814 = vunpack.c.l.b16 %v777
      %v815 = vunpack.c.l.b16 %v778
      %v816 = vunpack.c.l.b16 %v779
      %v817 = vunpack.c.l.b16 %v780
      %v818 = vunpack.c.l.b16 %v781
      %v819 = vunpack.c.l.b16 %v782
      %v820 = vunpack.c.l.b16 %v783
      %v821 = vpack.c.b16 %v806, %v805
      %v822 = vpack.c.b16 %v808, %v807
      %v823 = vpack.c.b16 %v810, %v809
      %v824 = vpack.c.b16 %v812, %v811
      %v825 = vpack.c.b16 %v814, %v813
      %v826 = vpack.c.b16 %v816, %v815
      %v827 = vpack.c.b16 %v818, %v817
      %v828 = vpack.c.b16 %v820, %v819
      %vm829 = vcmask 31744
      %v831 = vsel %vm829, %v821, 0
      %v834 = vsel %vm829, %v822, 0
      %v837 = vsel %vm829, %v823, 0
      %v840 = vsel %vm829, %v824, 0
      %v843 = vsel %vm829, %v825, 0
      %v846 = vsel %vm829, %v826, 0
      %v849 = vsel %vm829, %v827, 0
      %v852 = vsel %vm829, %v828, 0
      %vm854 = vcmask 1041408
      %v856 = vsel %vm854, %v784, 0
      %858 = vmatpush.bf16.msra.mxu0 0
      %859 = vmatpush.bf16.msra.mxu0 0
      %860 = vmatpush.bf16.msra.mxu0 0
      %861 = vmatpush.bf16.msra.mxu0 0
      %862 = vmatpush.bf16.msra.mxu0 0
      %863 = vmatpush.bf16.msra.mxu0 0
      %864 = vmatpush.bf16.msra.mxu0 0
      %865 = vmatpush.bf16.msra.mxu0 %v856
      %866 = vmatmul.bf16.gmra.mxu0 %v831
      %v867 = vpop.f32.mrf.mxu0
      %v868 = vadd.f32 %v787, %v867
      %v869 = vpop.f32.mrf.mxu0
      %v870 = vadd.f32 %v787, %v869
      %871 = vmatmul.bf16.gmra.mxu0 %v834
      %v872 = vpop.f32.mrf.mxu0
      %v873 = vadd.f32 %v787, %v872
      %v874 = vpop.f32.mrf.mxu0
      %v875 = vadd.f32 %v787, %v874
      %876 = vmatmul.bf16.gmra.mxu0 %v837
      %v877 = vpop.f32.mrf.mxu0
      %v878 = vadd.f32 %v787, %v877
      %v879 = vpop.f32.mrf.mxu0
      %v880 = vadd.f32 %v787, %v879
      %881 = vmatmul.bf16.gmra.mxu0 %v840
      %v882 = vpop.f32.mrf.mxu0
      %v883 = vadd.f32 %v787, %v882
      %v884 = vpop.f32.mrf.mxu0
      %v885 = vadd.f32 %v787, %v884
      %886 = vmatmul.bf16.gmra.mxu0 %v843
      %v887 = vpop.f32.mrf.mxu0
      %v888 = vadd.f32 %v787, %v887
      %v889 = vpop.f32.mrf.mxu0
      %v890 = vadd.f32 %v787, %v889
      %891 = vmatmul.bf16.gmra.mxu0 %v846
      %v892 = vpop.f32.mrf.mxu0
      %v893 = vadd.f32 %v787, %v892
      %v894 = vpop.f32.mrf.mxu0
      %v895 = vadd.f32 %v787, %v894
      %896 = vmatmul.bf16.gmra.mxu0 %v849
      %v897 = vpop.f32.mrf.mxu0
      %v898 = vadd.f32 %v787, %v897
      %v899 = vpop.f32.mrf.mxu0
      %v900 = vadd.f32 %v787, %v899
      %901 = vmatmul.bf16.gmra.mxu0 %v852
      %v902 = vpop.f32.mrf.mxu0
      %v903 = vadd.f32 %v787, %v902
      %v904 = vpop.f32.mrf.mxu0
      %v905 = vadd.f32 %v787, %v904
      %906 = vdwg.mxu0
      %v907 = vld [vmem:[#allocation2] sm:$0xf]
      %v908 = vld [vmem:[#allocation2 + $0x4] sm:$0xf]
      %v909 = vld [vmem:[#allocation2 + $0x8] sm:$0x1]
      %v910 = vld [vmem:[#allocation2 + $0xc] sm:$0xf]
      %v911 = vld [vmem:[#allocation2 + $0x10] sm:$0xf]
      %v912 = vld [vmem:[#allocation2 + $0x14] sm:$0x1]
      %v913 = vld [vmem:[#allocation2 + $0x18] sm:$0xf]
      %v914 = vld [vmem:[#allocation2 + $0x1c] sm:$0xf]
      %v915 = vld [vmem:[#allocation2 + $0x20] sm:$0x1]
      %v916 = vld [vmem:[#allocation2 + $0x24] sm:$0xf]
      %v917 = vld [vmem:[#allocation2 + $0x28] sm:$0xf]
      %v918 = vld [vmem:[#allocation2 + $0x2c] sm:$0x1]
      %v919 = vld [vmem:[#allocation2 + $0x30] sm:$0xf]
      %v920 = vld [vmem:[#allocation2 + $0x34] sm:$0xf]
      %v921 = vld [vmem:[#allocation2 + $0x38] sm:$0x1]
      %v922 = vld [vmem:[#allocation2 + $0x3c] sm:$0xf]
      %v923 = vld [vmem:[#allocation2 + $0x40] sm:$0xf]
      %v924 = vld [vmem:[#allocation2 + $0x44] sm:$0x1]
      %v925 = vld [vmem:[#allocation2 + $0x48] sm:$0xf]
      %v926 = vld [vmem:[#allocation2 + $0x4c] sm:$0xf]
      %v927 = vld [vmem:[#allocation2 + $0x50] sm:$0x1]
      %v928 = vld [vmem:[#allocation2 + $0x54] sm:$0xf]
      %v929 = vld [vmem:[#allocation2 + $0x58] sm:$0xf]
      %v930 = vld [vmem:[#allocation2 + $0x5c] sm:$0x1]
      %s931 = scalar_lea.vmem %s3, 2
      %v932 = vld [vmem:[%s931] sm:$0x3]
      %vm933 = vsmask.f32 3328
      %vm934 = vsmask.f32 7440
      %vm935 = vmor %vm933, %vm934
      %v937 = vshrl.u32 %v907, 16
      %v939 = vrot.slane %v937, 4
      %v940 = vshll.u32 %v907, 16
      %v942 = vrot.slane %v940, 5
      %v943 = vor.u32 %v939, %v942
      %v944 = vrot.slane %v943, 4
      %v946 = vshll.u32 %v908, 16
      %v948 = vrot.slane %v946, 5
      %v949 = vsel %vm935, %v944, %v948
      %v950 = vshrl.u32 %v908, 16
      %v952 = vrot.slane %v950, 4
      %v953 = vor.u32 %v952, %v948
      %v954 = vrot.slane %v953, 4
      %v956 = vshll.u32 %v909, 16
      %v958 = vrot.slane %v956, 5
      %v959 = vsel %vm935, %v954, %v958
      %v961 = vshrl.u32 %v910, 16
      %v963 = vrot.slane %v961, 4
      %v964 = vshll.u32 %v910, 16
      %v966 = vrot.slane %v964, 5
      %v967 = vor.u32 %v963, %v966
      %v968 = vrot.slane %v967, 4
      %v970 = vshll.u32 %v911, 16
      %v972 = vrot.slane %v970, 5
      %v973 = vsel %vm935, %v968, %v972
      %v974 = vshrl.u32 %v911, 16
      %v976 = vrot.slane %v974, 4
      %v977 = vor.u32 %v976, %v972
      %v978 = vrot.slane %v977, 4
      %v980 = vshll.u32 %v912, 16
      %v982 = vrot.slane %v980, 5
      %v983 = vsel %vm935, %v978, %v982
      %v985 = vshrl.u32 %v913, 16
      %v987 = vrot.slane %v985, 4
      %v988 = vshll.u32 %v913, 16
      %v990 = vrot.slane %v988, 5
      %v991 = vor.u32 %v987, %v990
      %v992 = vrot.slane %v991, 4
      %v994 = vshll.u32 %v914, 16
      %v996 = vrot.slane %v994, 5
      %v997 = vsel %vm935, %v992, %v996
      %v998 = vshrl.u32 %v914, 16
      %v1000 = vrot.slane %v998, 4
      %v1001 = vor.u32 %v1000, %v996
      %v1002 = vrot.slane %v1001, 4
      %v1004 = vshll.u32 %v915, 16
      %v1006 = vrot.slane %v1004, 5
      %v1007 = vsel %vm935, %v1002, %v1006
      %v1009 = vshrl.u32 %v916, 16
      %v1011 = vrot.slane %v1009, 4
      %v1012 = vshll.u32 %v916, 16
      %v1014 = vrot.slane %v1012, 5
      %v1015 = vor.u32 %v1011, %v1014
      %v1016 = vrot.slane %v1015, 4
      %v1018 = vshll.u32 %v917, 16
      %v1020 = vrot.slane %v1018, 5
      %v1021 = vsel %vm935, %v1016, %v1020
      %v1022 = vshrl.u32 %v917, 16
      %v1024 = vrot.slane %v1022, 4
      %v1025 = vor.u32 %v1024, %v1020
      %v1026 = vrot.slane %v1025, 4
      %v1028 = vshll.u32 %v918, 16
      %v1030 = vrot.slane %v1028, 5
      %v1031 = vsel %vm935, %v1026, %v1030
      %v1033 = vshrl.u32 %v919, 16
      %v1035 = vrot.slane %v1033, 4
      %v1036 = vshll.u32 %v919, 16
      %v1038 = vrot.slane %v1036, 5
      %v1039 = vor.u32 %v1035, %v1038
      %v1040 = vrot.slane %v1039, 4
      %v1042 = vshll.u32 %v920, 16
      %v1044 = vrot.slane %v1042, 5
      %v1045 = vsel %vm935, %v1040, %v1044
      %v1046 = vshrl.u32 %v920, 16
      %v1048 = vrot.slane %v1046, 4
      %v1049 = vor.u32 %v1048, %v1044
      %v1050 = vrot.slane %v1049, 4
      %v1052 = vshll.u32 %v921, 16
      %v1054 = vrot.slane %v1052, 5
      %v1055 = vsel %vm935, %v1050, %v1054
      %v1057 = vshrl.u32 %v922, 16
      %v1059 = vrot.slane %v1057, 4
      %v1060 = vshll.u32 %v922, 16
      %v1062 = vrot.slane %v1060, 5
      %v1063 = vor.u32 %v1059, %v1062
      %v1064 = vrot.slane %v1063, 4
      %v1066 = vshll.u32 %v923, 16
      %v1068 = vrot.slane %v1066, 5
      %v1069 = vsel %vm935, %v1064, %v1068
      %v1070 = vshrl.u32 %v923, 16
      %v1072 = vrot.slane %v1070, 4
      %v1073 = vor.u32 %v1072, %v1068
      %v1074 = vrot.slane %v1073, 4
      %v1076 = vshll.u32 %v924, 16
      %v1078 = vrot.slane %v1076, 5
      %v1079 = vsel %vm935, %v1074, %v1078
      %v1081 = vshrl.u32 %v925, 16
      %v1083 = vrot.slane %v1081, 4
      %v1084 = vshll.u32 %v925, 16
      %v1086 = vrot.slane %v1084, 5
      %v1087 = vor.u32 %v1083, %v1086
      %v1088 = vrot.slane %v1087, 4
      %v1090 = vshll.u32 %v926, 16
      %v1092 = vrot.slane %v1090, 5
      %v1093 = vsel %vm935, %v1088, %v1092
      %v1094 = vshrl.u32 %v926, 16
      %v1096 = vrot.slane %v1094, 4
      %v1097 = vor.u32 %v1096, %v1092
      %v1098 = vrot.slane %v1097, 4
      %v1100 = vshll.u32 %v927, 16
      %v1102 = vrot.slane %v1100, 5
      %v1103 = vsel %vm935, %v1098, %v1102
      %v1105 = vshrl.u32 %v928, 16
      %v1107 = vrot.slane %v1105, 4
      %v1108 = vshll.u32 %v928, 16
      %v1110 = vrot.slane %v1108, 5
      %v1111 = vor.u32 %v1107, %v1110
      %v1112 = vrot.slane %v1111, 4
      %v1114 = vshll.u32 %v929, 16
      %v1116 = vrot.slane %v1114, 5
      %v1117 = vsel %vm935, %v1112, %v1116
      %v1118 = vshrl.u32 %v929, 16
      %v1120 = vrot.slane %v1118, 4
      %v1121 = vor.u32 %v1120, %v1116
      %v1122 = vrot.slane %v1121, 4
      %v1124 = vshll.u32 %v930, 16
      %v1126 = vrot.slane %v1124, 5
      %v1127 = vsel %vm935, %v1122, %v1126
      %v1128 = vunpack.c.l.b16 %v949
      %v1129 = vunpack.c.l.b16 %v959
      %v1130 = vunpack.c.l.b16 %v973
      %v1131 = vunpack.c.l.b16 %v983
      %v1132 = vunpack.c.l.b16 %v997
      %v1133 = vunpack.c.l.b16 %v1007
      %v1134 = vunpack.c.l.b16 %v1021
      %v1135 = vunpack.c.l.b16 %v1031
      %v1136 = vunpack.c.l.b16 %v1045
      %v1137 = vunpack.c.l.b16 %v1055
      %v1138 = vunpack.c.l.b16 %v1069
      %v1139 = vunpack.c.l.b16 %v1079
      %v1140 = vunpack.c.l.b16 %v1093
      %v1141 = vunpack.c.l.b16 %v1103
      %v1142 = vunpack.c.l.b16 %v1117
      %v1143 = vunpack.c.l.b16 %v1127
      %v1144 = vpack.c.b16 %v1129, %v1128
      %v1145 = vpack.c.b16 %v1131, %v1130
      %v1146 = vpack.c.b16 %v1133, %v1132
      %v1147 = vpack.c.b16 %v1135, %v1134
      %v1148 = vpack.c.b16 %v1137, %v1136
      %v1149 = vpack.c.b16 %v1139, %v1138
      %v1150 = vpack.c.b16 %v1141, %v1140
      %v1151 = vpack.c.b16 %v1143, %v1142
      %v1153 = vsel %vm829, %v1144, 0
      %v1156 = vsel %vm829, %v1145, 0
      %v1159 = vsel %vm829, %v1146, 0
      %v1162 = vsel %vm829, %v1147, 0
      %v1165 = vsel %vm829, %v1148, 0
      %v1168 = vsel %vm829, %v1149, 0
      %v1171 = vsel %vm829, %v1150, 0
      %v1174 = vsel %vm829, %v1151, 0
      %v1177 = vsel %vm854, %v932, 0
      %1179 = vmatpush.bf16.msra.mxu0 0
      %1180 = vmatpush.bf16.msra.mxu0 0
      %1181 = vmatpush.bf16.msra.mxu0 0
      %1182 = vmatpush.bf16.msra.mxu0 0
      %1183 = vmatpush.bf16.msra.mxu0 0
      %1184 = vmatpush.bf16.msra.mxu0 0
      %1185 = vmatpush.bf16.msra.mxu0 0
      %1186 = vmatpush.bf16.msra.mxu0 %v1177
      %1187 = vmatmul.bf16.gmra.mxu0 %v1153
      %v1188 = vpop.f32.mrf.mxu0
      %v1189 = vadd.f32 0.0, %v1188
      %v1190 = vpop.f32.mrf.mxu0
      %v1191 = vadd.f32 0.0, %v1190
      %1192 = vmatmul.bf16.gmra.mxu0 %v1156
      %v1193 = vpop.f32.mrf.mxu0
      %v1194 = vadd.f32 0.0, %v1193
      %v1195 = vpop.f32.mrf.mxu0
      %v1196 = vadd.f32 0.0, %v1195
      %1197 = vmatmul.bf16.gmra.mxu0 %v1159
      %v1198 = vpop.f32.mrf.mxu0
      %v1199 = vadd.f32 0.0, %v1198
      %v1200 = vpop.f32.mrf.mxu0
      %v1201 = vadd.f32 0.0, %v1200
      %1202 = vmatmul.bf16.gmra.mxu0 %v1162
      %v1203 = vpop.f32.mrf.mxu0
      %v1204 = vadd.f32 0.0, %v1203
      %v1205 = vpop.f32.mrf.mxu0
      %v1206 = vadd.f32 0.0, %v1205
      %1207 = vmatmul.bf16.gmra.mxu0 %v1165
      %v1208 = vpop.f32.mrf.mxu0
      %v1209 = vadd.f32 0.0, %v1208
      %v1210 = vpop.f32.mrf.mxu0
      %v1211 = vadd.f32 0.0, %v1210
      %1212 = vmatmul.bf16.gmra.mxu0 %v1168
      %v1213 = vpop.f32.mrf.mxu0
      %v1214 = vadd.f32 0.0, %v1213
      %v1215 = vpop.f32.mrf.mxu0
      %v1216 = vadd.f32 0.0, %v1215
      %1217 = vmatmul.bf16.gmra.mxu0 %v1171
      %v1218 = vpop.f32.mrf.mxu0
      %v1219 = vadd.f32 0.0, %v1218
      %v1220 = vpop.f32.mrf.mxu0
      %v1221 = vadd.f32 0.0, %v1220
      %1222 = vmatmul.bf16.gmra.mxu0 %v1174
      %v1223 = vpop.f32.mrf.mxu0
      %v1224 = vadd.f32 0.0, %v1223
      %v1225 = vpop.f32.mrf.mxu0
      %v1226 = vadd.f32 0.0, %v1225
      %1227 = vdwg.mxu0
      %v1228 = vadd.f32 %v868, %v1189
      %v1229 = vadd.f32 %v870, %v1191
      %v1230 = vadd.f32 %v873, %v1194
      %v1231 = vadd.f32 %v875, %v1196
      %v1232 = vadd.f32 %v878, %v1199
      %v1233 = vadd.f32 %v880, %v1201
      %v1234 = vadd.f32 %v883, %v1204
      %v1235 = vadd.f32 %v885, %v1206
      %v1236 = vadd.f32 %v888, %v1209
      %v1237 = vadd.f32 %v890, %v1211
      %v1238 = vadd.f32 %v893, %v1214
      %v1239 = vadd.f32 %v895, %v1216
      %v1240 = vadd.f32 %v898, %v1219
      %v1241 = vadd.f32 %v900, %v1221
      %v1242 = vadd.f32 %v903, %v1224
      %v1243 = vadd.f32 %v905, %v1226
      %v1244 = vld [vmem:[#allocation2] sm:$0xe]
      %v1245 = vld [vmem:[#allocation2 + $0xc] sm:$0xe]
      %v1246 = vld [vmem:[#allocation2 + $0x18] sm:$0xe]
      %v1247 = vld [vmem:[#allocation2 + $0x24] sm:$0xe]
      %v1248 = vld [vmem:[#allocation2 + $0x30] sm:$0xe]
      %v1249 = vld [vmem:[#allocation2 + $0x3c] sm:$0xe]
      %v1250 = vld [vmem:[#allocation2 + $0x48] sm:$0xe]
      %v1251 = vld [vmem:[#allocation2 + $0x54] sm:$0xe]
      %s1252 = scalar_lea.vmem %s3, 4
      %v1253 = vld [vmem:[%s1252] sm:$0x3]
      %vm1278 = vcmask 1042432
      %vm1279 = vcmask 1046532
      %vm1280 = vmor %vm1278, %vm1279
      %v1281 = vrot.slane %v1244, 5
      %v1282 = vrot.slane %v1281, 4
      %v1283 = vrot.slane %v908, 5
      %v1284 = vsel %vm1280, %v1282, %v1283
      %v1285 = vrot.slane %v1283, 4
      %v1286 = vrot.slane %v909, 5
      %v1287 = vsel %vm1280, %v1285, %v1286
      %v1288 = vrot.slane %v1245, 5
      %v1289 = vrot.slane %v1288, 4
      %v1290 = vrot.slane %v911, 5
      %v1291 = vsel %vm1280, %v1289, %v1290
      %v1292 = vrot.slane %v1290, 4
      %v1293 = vrot.slane %v912, 5
      %v1294 = vsel %vm1280, %v1292, %v1293
      %v1295 = vrot.slane %v1246, 5
      %v1296 = vrot.slane %v1295, 4
      %v1297 = vrot.slane %v914, 5
      %v1298 = vsel %vm1280, %v1296, %v1297
      %v1299 = vrot.slane %v1297, 4
      %v1300 = vrot.slane %v915, 5
      %v1301 = vsel %vm1280, %v1299, %v1300
      %v1302 = vrot.slane %v1247, 5
      %v1303 = vrot.slane %v1302, 4
      %v1304 = vrot.slane %v917, 5
      %v1305 = vsel %vm1280, %v1303, %v1304
      %v1306 = vrot.slane %v1304, 4
      %v1307 = vrot.slane %v918, 5
      %v1308 = vsel %vm1280, %v1306, %v1307
      %v1309 = vrot.slane %v1248, 5
      %v1310 = vrot.slane %v1309, 4
      %v1311 = vrot.slane %v920, 5
      %v1312 = vsel %vm1280, %v1310, %v1311
      %v1313 = vrot.slane %v1311, 4
      %v1314 = vrot.slane %v921, 5
      %v1315 = vsel %vm1280, %v1313, %v1314
      %v1316 = vrot.slane %v1249, 5
      %v1317 = vrot.slane %v1316, 4
      %v1318 = vrot.slane %v923, 5
      %v1319 = vsel %vm1280, %v1317, %v1318
      %v1320 = vrot.slane %v1318, 4
      %v1321 = vrot.slane %v924, 5
      %v1322 = vsel %vm1280, %v1320, %v1321
      %v1323 = vrot.slane %v1250, 5
      %v1324 = vrot.slane %v1323, 4
      %v1325 = vrot.slane %v926, 5
      %v1326 = vsel %vm1280, %v1324, %v1325
      %v1327 = vrot.slane %v1325, 4
      %v1328 = vrot.slane %v927, 5
      %v1329 = vsel %vm1280, %v1327, %v1328
      %v1330 = vrot.slane %v1251, 5
      %v1331 = vrot.slane %v1330, 4
      %v1332 = vrot.slane %v929, 5
      %v1333 = vsel %vm1280, %v1331, %v1332
      %v1334 = vrot.slane %v1332, 4
      %v1335 = vrot.slane %v930, 5
      %v1336 = vsel %vm1280, %v1334, %v1335
      %v1337 = vunpack.c.l.b16 %v1284
      %v1338 = vunpack.c.l.b16 %v1287
      %v1339 = vunpack.c.l.b16 %v1291
      %v1340 = vunpack.c.l.b16 %v1294
      %v1341 = vunpack.c.l.b16 %v1298
      %v1342 = vunpack.c.l.b16 %v1301
      %v1343 = vunpack.c.l.b16 %v1305
      %v1344 = vunpack.c.l.b16 %v1308
      %v1345 = vunpack.c.l.b16 %v1312
      %v1346 = vunpack.c.l.b16 %v1315
      %v1347 = vunpack.c.l.b16 %v1319
      %v1348 = vunpack.c.l.b16 %v1322
      %v1349 = vunpack.c.l.b16 %v1326
      %v1350 = vunpack.c.l.b16 %v1329
      %v1351 = vunpack.c.l.b16 %v1333
      %v1352 = vunpack.c.l.b16 %v1336
      %v1353 = vpack.c.b16 %v1338, %v1337
      %v1354 = vpack.c.b16 %v1340, %v1339
      %v1355 = vpack.c.b16 %v1342, %v1341
      %v1356 = vpack.c.b16 %v1344, %v1343
      %v1357 = vpack.c.b16 %v1346, %v1345
      %v1358 = vpack.c.b16 %v1348, %v1347
      %v1359 = vpack.c.b16 %v1350, %v1349
      %v1360 = vpack.c.b16 %v1352, %v1351
      %v1362 = vsel %vm829, %v1353, 0
      %v1365 = vsel %vm829, %v1354, 0
      %v1368 = vsel %vm829, %v1355, 0
      %v1371 = vsel %vm829, %v1356, 0
      %v1374 = vsel %vm829, %v1357, 0
      %v1377 = vsel %vm829, %v1358, 0
      %v1380 = vsel %vm829, %v1359, 0
      %v1383 = vsel %vm829, %v1360, 0
      %v1386 = vsel %vm854, %v1253, 0
      %1388 = vmatpush.bf16.msra.mxu0 0
      %1389 = vmatpush.bf16.msra.mxu0 0
      %1390 = vmatpush.bf16.msra.mxu0 0
      %1391 = vmatpush.bf16.msra.mxu0 0
      %1392 = vmatpush.bf16.msra.mxu0 0
      %1393 = vmatpush.bf16.msra.mxu0 0
      %1394 = vmatpush.bf16.msra.mxu0 0
      %1395 = vmatpush.bf16.msra.mxu0 %v1386
      %1396 = vmatmul.bf16.gmra.mxu0 %v1362
      %v1397 = vpop.f32.mrf.mxu0
      %v1398 = vadd.f32 0.0, %v1397
      %v1399 = vpop.f32.mrf.mxu0
      %v1400 = vadd.f32 0.0, %v1399
      %1401 = vmatmul.bf16.gmra.mxu0 %v1365
      %v1402 = vpop.f32.mrf.mxu0
      %v1403 = vadd.f32 0.0, %v1402
      %v1404 = vpop.f32.mrf.mxu0
      %v1405 = vadd.f32 0.0, %v1404
      %1406 = vmatmul.bf16.gmra.mxu0 %v1368
      %v1407 = vpop.f32.mrf.mxu0
      %v1408 = vadd.f32 0.0, %v1407
      %v1409 = vpop.f32.mrf.mxu0
      %v1410 = vadd.f32 0.0, %v1409
      %1411 = vmatmul.bf16.gmra.mxu0 %v1371
      %v1412 = vpop.f32.mrf.mxu0
      %v1413 = vadd.f32 0.0, %v1412
      %v1414 = vpop.f32.mrf.mxu0
      %v1415 = vadd.f32 0.0, %v1414
      %1416 = vmatmul.bf16.gmra.mxu0 %v1374
      %v1417 = vpop.f32.mrf.mxu0
      %v1418 = vadd.f32 0.0, %v1417
      %v1419 = vpop.f32.mrf.mxu0
      %v1420 = vadd.f32 0.0, %v1419
      %1421 = vmatmul.bf16.gmra.mxu0 %v1377
      %v1422 = vpop.f32.mrf.mxu0
      %v1423 = vadd.f32 0.0, %v1422
      %v1424 = vpop.f32.mrf.mxu0
      %v1425 = vadd.f32 0.0, %v1424
      %1426 = vmatmul.bf16.gmra.mxu0 %v1380
      %v1427 = vpop.f32.mrf.mxu0
      %v1428 = vadd.f32 0.0, %v1427
      %v1429 = vpop.f32.mrf.mxu0
      %v1430 = vadd.f32 0.0, %v1429
      %1431 = vmatmul.bf16.gmra.mxu0 %v1383
      %v1432 = vpop.f32.mrf.mxu0
      %v1433 = vadd.f32 0.0, %v1432
      %v1434 = vpop.f32.mrf.mxu0
      %v1435 = vadd.f32 0.0, %v1434
      %1436 = vdwg.mxu0
      %v1437 = vadd.f32 %v1228, %v1398
      %v1438 = vadd.f32 %v1229, %v1400
      %v1439 = vadd.f32 %v1230, %v1403
      %v1440 = vadd.f32 %v1231, %v1405
      %v1441 = vadd.f32 %v1232, %v1408
      %v1442 = vadd.f32 %v1233, %v1410
      %v1443 = vadd.f32 %v1234, %v1413
      %v1444 = vadd.f32 %v1235, %v1415
      %v1445 = vadd.f32 %v1236, %v1418
      %v1446 = vadd.f32 %v1237, %v1420
      %v1447 = vadd.f32 %v1238, %v1423
      %v1448 = vadd.f32 %v1239, %v1425
      %v1449 = vadd.f32 %v1240, %v1428
      %v1450 = vadd.f32 %v1241, %v1430
      %v1451 = vadd.f32 %v1242, %v1433
      %v1452 = vadd.f32 %v1243, %v1435
      %v1453 = vld [vmem:[%s711] sm:$0xf]
      %v1454 = vld [vmem:[%s711 + $0x4] sm:$0xf]
      %v1455 = vld [vmem:[%s711 + $0xc] sm:$0xf]
      %v1456 = vld [vmem:[%s711 + $0x10] sm:$0xf]
      %v1457 = vld [vmem:[%s711 + $0x18] sm:$0xf]
      %v1458 = vld [vmem:[%s711 + $0x1c] sm:$0xf]
      %v1459 = vld [vmem:[%s711 + $0x24] sm:$0xf]
      %v1460 = vld [vmem:[%s711 + $0x28] sm:$0xf]
      %v1461 = vld [vmem:[%s711 + $0x30] sm:$0xf]
      %v1462 = vld [vmem:[%s711 + $0x34] sm:$0xf]
      %v1463 = vld [vmem:[%s711 + $0x3c] sm:$0xf]
      %v1464 = vld [vmem:[%s711 + $0x40] sm:$0xf]
      %v1465 = vld [vmem:[%s711 + $0x48] sm:$0xf]
      %v1466 = vld [vmem:[%s711 + $0x4c] sm:$0xf]
      %v1467 = vld [vmem:[%s711 + $0x54] sm:$0xf]
      %v1468 = vld [vmem:[%s711 + $0x58] sm:$0xf]
      %s1469 = scalar_lea.vmem %s3, 6
      %v1470 = vld [vmem:[%s1469] sm:$0x3]
      %v1487 = vunpack.c.l.b16 %v1453
      %v1488 = vunpack.c.l.b16 %v1454
      %v1489 = vunpack.c.l.b16 %v1455
      %v1490 = vunpack.c.l.b16 %v1456
      %v1491 = vunpack.c.l.b16 %v1457
      %v1492 = vunpack.c.l.b16 %v1458
      %v1493 = vunpack.c.l.b16 %v1459
      %v1494 = vunpack.c.l.b16 %v1460
      %v1495 = vunpack.c.l.b16 %v1461
      %v1496 = vunpack.c.l.b16 %v1462
      %v1497 = vunpack.c.l.b16 %v1463
      %v1498 = vunpack.c.l.b16 %v1464
      %v1499 = vunpack.c.l.b16 %v1465
      %v1500 = vunpack.c.l.b16 %v1466
      %v1501 = vunpack.c.l.b16 %v1467
      %v1502 = vunpack.c.l.b16 %v1468
      %v1503 = vpack.c.b16 %v1488, %v1487
      %v1504 = vpack.c.b16 %v1490, %v1489
      %v1505 = vpack.c.b16 %v1492, %v1491
      %v1506 = vpack.c.b16 %v1494, %v1493
      %v1507 = vpack.c.b16 %v1496, %v1495
      %v1508 = vpack.c.b16 %v1498, %v1497
      %v1509 = vpack.c.b16 %v1500, %v1499
      %v1510 = vpack.c.b16 %v1502, %v1501
      %v1512 = vsel %vm829, %v1503, 0
      %v1515 = vsel %vm829, %v1504, 0
      %v1518 = vsel %vm829, %v1505, 0
      %v1521 = vsel %vm829, %v1506, 0
      %v1524 = vsel %vm829, %v1507, 0
      %v1527 = vsel %vm829, %v1508, 0
      %v1530 = vsel %vm829, %v1509, 0
      %v1533 = vsel %vm829, %v1510, 0
      %v1536 = vsel %vm854, %v1470, 0
      %1538 = vmatpush.bf16.msra.mxu0 0
      %1539 = vmatpush.bf16.msra.mxu0 0
      %1540 = vmatpush.bf16.msra.mxu0 0
      %1541 = vmatpush.bf16.msra.mxu0 0
      %1542 = vmatpush.bf16.msra.mxu0 0
      %1543 = vmatpush.bf16.msra.mxu0 0
      %1544 = vmatpush.bf16.msra.mxu0 0
      %1545 = vmatpush.bf16.msra.mxu0 %v1536
      %1546 = vmatmul.bf16.gmra.mxu0 %v1512
      %v1547 = vpop.f32.mrf.mxu0
      %v1548 = vadd.f32 0.0, %v1547
      %v1549 = vpop.f32.mrf.mxu0
      %v1550 = vadd.f32 0.0, %v1549
      %1551 = vmatmul.bf16.gmra.mxu0 %v1515
      %v1552 = vpop.f32.mrf.mxu0
      %v1553 = vadd.f32 0.0, %v1552
      %v1554 = vpop.f32.mrf.mxu0
      %v1555 = vadd.f32 0.0, %v1554
      %1556 = vmatmul.bf16.gmra.mxu0 %v1518
      %v1557 = vpop.f32.mrf.mxu0
      %v1558 = vadd.f32 0.0, %v1557
      %v1559 = vpop.f32.mrf.mxu0
      %v1560 = vadd.f32 0.0, %v1559
      %1561 = vmatmul.bf16.gmra.mxu0 %v1521
      %v1562 = vpop.f32.mrf.mxu0
      %v1563 = vadd.f32 0.0, %v1562
      %v1564 = vpop.f32.mrf.mxu0
      %v1565 = vadd.f32 0.0, %v1564
      %1566 = vmatmul.bf16.gmra.mxu0 %v1524
      %v1567 = vpop.f32.mrf.mxu0
      %v1568 = vadd.f32 0.0, %v1567
      %v1569 = vpop.f32.mrf.mxu0
      %v1570 = vadd.f32 0.0, %v1569
      %1571 = vmatmul.bf16.gmra.mxu0 %v1527
      %v1572 = vpop.f32.mrf.mxu0
      %v1573 = vadd.f32 0.0, %v1572
      %v1574 = vpop.f32.mrf.mxu0
      %v1575 = vadd.f32 0.0, %v1574
      %1576 = vmatmul.bf16.gmra.mxu0 %v1530
      %v1577 = vpop.f32.mrf.mxu0
      %v1578 = vadd.f32 0.0, %v1577
      %v1579 = vpop.f32.mrf.mxu0
      %v1580 = vadd.f32 0.0, %v1579
      %1581 = vmatmul.bf16.gmra.mxu0 %v1533
      %v1582 = vpop.f32.mrf.mxu0
      %v1583 = vadd.f32 0.0, %v1582
      %v1584 = vpop.f32.mrf.mxu0
      %v1585 = vadd.f32 0.0, %v1584
      %1586 = vdwg.mxu0
      %v1587 = vadd.f32 %v1437, %v1548
      %v1588 = vadd.f32 %v1438, %v1550
      %v1589 = vadd.f32 %v1439, %v1553
      %v1590 = vadd.f32 %v1440, %v1555
      %v1591 = vadd.f32 %v1441, %v1558
      %v1592 = vadd.f32 %v1442, %v1560
      %v1593 = vadd.f32 %v1443, %v1563
      %v1594 = vadd.f32 %v1444, %v1565
      %v1595 = vadd.f32 %v1445, %v1568
      %v1596 = vadd.f32 %v1446, %v1570
      %v1597 = vadd.f32 %v1447, %v1573
      %v1598 = vadd.f32 %v1448, %v1575
      %v1599 = vadd.f32 %v1449, %v1578
      %v1600 = vadd.f32 %v1450, %v1580
      %v1601 = vadd.f32 %v1451, %v1583
      %v1602 = vadd.f32 %v1452, %v1585
      %v1603 = vld [vmem:[%s711] sm:$0xf]
      %v1604 = vld [vmem:[%s711 + $0x4] sm:$0xf]
      %v1605 = vld [vmem:[%s711 + $0x8] sm:$0x1]
      %v1606 = vld [vmem:[%s711 + $0xc] sm:$0xf]
      %v1607 = vld [vmem:[%s711 + $0x10] sm:$0xf]
      %v1608 = vld [vmem:[%s711 + $0x14] sm:$0x1]
      %v1609 = vld [vmem:[%s711 + $0x18] sm:$0xf]
      %v1610 = vld [vmem:[%s711 + $0x1c] sm:$0xf]
      %v1611 = vld [vmem:[%s711 + $0x20] sm:$0x1]
      %v1612 = vld [vmem:[%s711 + $0x24] sm:$0xf]
      %v1613 = vld [vmem:[%s711 + $0x28] sm:$0xf]
      %v1614 = vld [vmem:[%s711 + $0x2c] sm:$0x1]
      %v1615 = vld [vmem:[%s711 + $0x30] sm:$0xf]
      %v1616 = vld [vmem:[%s711 + $0x34] sm:$0xf]
      %v1617 = vld [vmem:[%s711 + $0x38] sm:$0x1]
      %v1618 = vld [vmem:[%s711 + $0x3c] sm:$0xf]
      %v1619 = vld [vmem:[%s711 + $0x40] sm:$0xf]
      %v1620 = vld [vmem:[%s711 + $0x44] sm:$0x1]
      %v1621 = vld [vmem:[%s711 + $0x48] sm:$0xf]
      %v1622 = vld [vmem:[%s711 + $0x4c] sm:$0xf]
      %v1623 = vld [vmem:[%s711 + $0x50] sm:$0x1]
      %v1624 = vld [vmem:[%s711 + $0x54] sm:$0xf]
      %v1625 = vld [vmem:[%s711 + $0x58] sm:$0xf]
      %v1626 = vld [vmem:[%s711 + $0x5c] sm:$0x1]
      %s1627 = scalar_lea.vmem %s3, 8
      %v1628 = vld [vmem:[%s1627] sm:$0x3]
      %v1630 = vshrl.u32 %v1603, 16
      %v1632 = vrot.slane %v1630, 4
      %v1633 = vshll.u32 %v1603, 16
      %v1635 = vrot.slane %v1633, 5
      %v1636 = vor.u32 %v1632, %v1635
      %v1637 = vrot.slane %v1636, 4
      %v1639 = vshll.u32 %v1604, 16
      %v1641 = vrot.slane %v1639, 5
      %v1642 = vsel %vm935, %v1637, %v1641
      %v1643 = vshrl.u32 %v1604, 16
      %v1645 = vrot.slane %v1643, 4
      %v1646 = vor.u32 %v1645, %v1641
      %v1647 = vrot.slane %v1646, 4
      %v1649 = vshll.u32 %v1605, 16
      %v1651 = vrot.slane %v1649, 5
      %v1652 = vsel %vm935, %v1647, %v1651
      %v1654 = vshrl.u32 %v1606, 16
      %v1656 = vrot.slane %v1654, 4
      %v1657 = vshll.u32 %v1606, 16
      %v1659 = vrot.slane %v1657, 5
      %v1660 = vor.u32 %v1656, %v1659
      %v1661 = vrot.slane %v1660, 4
      %v1663 = vshll.u32 %v1607, 16
      %v1665 = vrot.slane %v1663, 5
      %v1666 = vsel %vm935, %v1661, %v1665
      %v1667 = vshrl.u32 %v1607, 16
      %v1669 = vrot.slane %v1667, 4
      %v1670 = vor.u32 %v1669, %v1665
      %v1671 = vrot.slane %v1670, 4
      %v1673 = vshll.u32 %v1608, 16
      %v1675 = vrot.slane %v1673, 5
      %v1676 = vsel %vm935, %v1671, %v1675
      %v1678 = vshrl.u32 %v1609, 16
      %v1680 = vrot.slane %v1678, 4
      %v1681 = vshll.u32 %v1609, 16
      %v1683 = vrot.slane %v1681, 5
      %v1684 = vor.u32 %v1680, %v1683
      %v1685 = vrot.slane %v1684, 4
      %v1687 = vshll.u32 %v1610, 16
      %v1689 = vrot.slane %v1687, 5
      %v1690 = vsel %vm935, %v1685, %v1689
      %v1691 = vshrl.u32 %v1610, 16
      %v1693 = vrot.slane %v1691, 4
      %v1694 = vor.u32 %v1693, %v1689
      %v1695 = vrot.slane %v1694, 4
      %v1697 = vshll.u32 %v1611, 16
      %v1699 = vrot.slane %v1697, 5
      %v1700 = vsel %vm935, %v1695, %v1699
      %v1702 = vshrl.u32 %v1612, 16
      %v1704 = vrot.slane %v1702, 4
      %v1705 = vshll.u32 %v1612, 16
      %v1707 = vrot.slane %v1705, 5
      %v1708 = vor.u32 %v1704, %v1707
      %v1709 = vrot.slane %v1708, 4
      %v1711 = vshll.u32 %v1613, 16
      %v1713 = vrot.slane %v1711, 5
      %v1714 = vsel %vm935, %v1709, %v1713
      %v1715 = vshrl.u32 %v1613, 16
      %v1717 = vrot.slane %v1715, 4
      %v1718 = vor.u32 %v1717, %v1713
      %v1719 = vrot.slane %v1718, 4
      %v1721 = vshll.u32 %v1614, 16
      %v1723 = vrot.slane %v1721, 5
      %v1724 = vsel %vm935, %v1719, %v1723
      %v1726 = vshrl.u32 %v1615, 16
      %v1728 = vrot.slane %v1726, 4
      %v1729 = vshll.u32 %v1615, 16
      %v1731 = vrot.slane %v1729, 5
      %v1732 = vor.u32 %v1728, %v1731
      %v1733 = vrot.slane %v1732, 4
      %v1735 = vshll.u32 %v1616, 16
      %v1737 = vrot.slane %v1735, 5
      %v1738 = vsel %vm935, %v1733, %v1737
      %v1739 = vshrl.u32 %v1616, 16
      %v1741 = vrot.slane %v1739, 4
      %v1742 = vor.u32 %v1741, %v1737
      %v1743 = vrot.slane %v1742, 4
      %v1745 = vshll.u32 %v1617, 16
      %v1747 = vrot.slane %v1745, 5
      %v1748 = vsel %vm935, %v1743, %v1747
      %v1750 = vshrl.u32 %v1618, 16
      %v1752 = vrot.slane %v1750, 4
      %v1753 = vshll.u32 %v1618, 16
      %v1755 = vrot.slane %v1753, 5
      %v1756 = vor.u32 %v1752, %v1755
      %v1757 = vrot.slane %v1756, 4
      %v1759 = vshll.u32 %v1619, 16
      %v1761 = vrot.slane %v1759, 5
      %v1762 = vsel %vm935, %v1757, %v1761
      %v1763 = vshrl.u32 %v1619, 16
      %v1765 = vrot.slane %v1763, 4
      %v1766 = vor.u32 %v1765, %v1761
      %v1767 = vrot.slane %v1766, 4
      %v1769 = vshll.u32 %v1620, 16
      %v1771 = vrot.slane %v1769, 5
      %v1772 = vsel %vm935, %v1767, %v1771
      %v1774 = vshrl.u32 %v1621, 16
      %v1776 = vrot.slane %v1774, 4
      %v1777 = vshll.u32 %v1621, 16
      %v1779 = vrot.slane %v1777, 5
      %v1780 = vor.u32 %v1776, %v1779
      %v1781 = vrot.slane %v1780, 4
      %v1783 = vshll.u32 %v1622, 16
      %v1785 = vrot.slane %v1783, 5
      %v1786 = vsel %vm935, %v1781, %v1785
      %v1787 = vshrl.u32 %v1622, 16
      %v1789 = vrot.slane %v1787, 4
      %v1790 = vor.u32 %v1789, %v1785
      %v1791 = vrot.slane %v1790, 4
      %v1793 = vshll.u32 %v1623, 16
      %v1795 = vrot.slane %v1793, 5
      %v1796 = vsel %vm935, %v1791, %v1795
      %v1798 = vshrl.u32 %v1624, 16
      %v1800 = vrot.slane %v1798, 4
      %v1801 = vshll.u32 %v1624, 16
      %v1803 = vrot.slane %v1801, 5
      %v1804 = vor.u32 %v1800, %v1803
      %v1805 = vrot.slane %v1804, 4
      %v1807 = vshll.u32 %v1625, 16
      %v1809 = vrot.slane %v1807, 5
      %v1810 = vsel %vm935, %v1805, %v1809
      %v1811 = vshrl.u32 %v1625, 16
      %v1813 = vrot.slane %v1811, 4
      %v1814 = vor.u32 %v1813, %v1809
      %v1815 = vrot.slane %v1814, 4
      %v1817 = vshll.u32 %v1626, 16
      %v1819 = vrot.slane %v1817, 5
      %v1820 = vsel %vm935, %v1815, %v1819
      %v1821 = vunpack.c.l.b16 %v1642
      %v1822 = vunpack.c.l.b16 %v1652
      %v1823 = vunpack.c.l.b16 %v1666
      %v1824 = vunpack.c.l.b16 %v1676
      %v1825 = vunpack.c.l.b16 %v1690
      %v1826 = vunpack.c.l.b16 %v1700
      %v1827 = vunpack.c.l.b16 %v1714
      %v1828 = vunpack.c.l.b16 %v1724
      %v1829 = vunpack.c.l.b16 %v1738
      %v1830 = vunpack.c.l.b16 %v1748
      %v1831 = vunpack.c.l.b16 %v1762
      %v1832 = vunpack.c.l.b16 %v1772
      %v1833 = vunpack.c.l.b16 %v1786
      %v1834 = vunpack.c.l.b16 %v1796
      %v1835 = vunpack.c.l.b16 %v1810
      %v1836 = vunpack.c.l.b16 %v1820
      %v1837 = vpack.c.b16 %v1822, %v1821
      %v1838 = vpack.c.b16 %v1824, %v1823
      %v1839 = vpack.c.b16 %v1826, %v1825
      %v1840 = vpack.c.b16 %v1828, %v1827
      %v1841 = vpack.c.b16 %v1830, %v1829
      %v1842 = vpack.c.b16 %v1832, %v1831
      %v1843 = vpack.c.b16 %v1834, %v1833
      %v1844 = vpack.c.b16 %v1836, %v1835
      %v1846 = vsel %vm829, %v1837, 0
      %v1849 = vsel %vm829, %v1838, 0
      %v1852 = vsel %vm829, %v1839, 0
      %v1855 = vsel %vm829, %v1840, 0
      %v1858 = vsel %vm829, %v1841, 0
      %v1861 = vsel %vm829, %v1842, 0
      %v1864 = vsel %vm829, %v1843, 0
      %v1867 = vsel %vm829, %v1844, 0
      %v1870 = vsel %vm854, %v1628, 0
      %1872 = vmatpush.bf16.msra.mxu0 0
      %1873 = vmatpush.bf16.msra.mxu0 0
      %1874 = vmatpush.bf16.msra.mxu0 0
      %1875 = vmatpush.bf16.msra.mxu0 0
      %1876 = vmatpush.bf16.msra.mxu0 0
      %1877 = vmatpush.bf16.msra.mxu0 0
      %1878 = vmatpush.bf16.msra.mxu0 0
      %1879 = vmatpush.bf16.msra.mxu0 %v1870
      %1880 = vmatmul.bf16.gmra.mxu0 %v1846
      %v1881 = vpop.f32.mrf.mxu0
      %v1882 = vadd.f32 0.0, %v1881
      %v1883 = vpop.f32.mrf.mxu0
      %v1884 = vadd.f32 0.0, %v1883
      %1885 = vmatmul.bf16.gmra.mxu0 %v1849
      %v1886 = vpop.f32.mrf.mxu0
      %v1887 = vadd.f32 0.0, %v1886
      %v1888 = vpop.f32.mrf.mxu0
      %v1889 = vadd.f32 0.0, %v1888
      %1890 = vmatmul.bf16.gmra.mxu0 %v1852
      %v1891 = vpop.f32.mrf.mxu0
      %v1892 = vadd.f32 0.0, %v1891
      %v1893 = vpop.f32.mrf.mxu0
      %v1894 = vadd.f32 0.0, %v1893
      %1895 = vmatmul.bf16.gmra.mxu0 %v1855
      %v1896 = vpop.f32.mrf.mxu0
      %v1897 = vadd.f32 0.0, %v1896
      %v1898 = vpop.f32.mrf.mxu0
      %v1899 = vadd.f32 0.0, %v1898
      %1900 = vmatmul.bf16.gmra.mxu0 %v1858
      %v1901 = vpop.f32.mrf.mxu0
      %v1902 = vadd.f32 0.0, %v1901
      %v1903 = vpop.f32.mrf.mxu0
      %v1904 = vadd.f32 0.0, %v1903
      %1905 = vmatmul.bf16.gmra.mxu0 %v1861
      %v1906 = vpop.f32.mrf.mxu0
      %v1907 = vadd.f32 0.0, %v1906
      %v1908 = vpop.f32.mrf.mxu0
      %v1909 = vadd.f32 0.0, %v1908
      %1910 = vmatmul.bf16.gmra.mxu0 %v1864
      %v1911 = vpop.f32.mrf.mxu0
      %v1912 = vadd.f32 0.0, %v1911
      %v1913 = vpop.f32.mrf.mxu0
      %v1914 = vadd.f32 0.0, %v1913
      %1915 = vmatmul.bf16.gmra.mxu0 %v1867
      %v1916 = vpop.f32.mrf.mxu0
      %v1917 = vadd.f32 0.0, %v1916
      %v1918 = vpop.f32.mrf.mxu0
      %v1919 = vadd.f32 0.0, %v1918
      %1920 = vdwg.mxu0
      %v1921 = vadd.f32 %v1587, %v1882
      %v1922 = vadd.f32 %v1588, %v1884
      %v1923 = vadd.f32 %v1589, %v1887
      %v1924 = vadd.f32 %v1590, %v1889
      %v1925 = vadd.f32 %v1591, %v1892
      %v1926 = vadd.f32 %v1592, %v1894
      %v1927 = vadd.f32 %v1593, %v1897
      %v1928 = vadd.f32 %v1594, %v1899
      %v1929 = vadd.f32 %v1595, %v1902
      %v1930 = vadd.f32 %v1596, %v1904
      %v1931 = vadd.f32 %v1597, %v1907
      %v1932 = vadd.f32 %v1598, %v1909
      %v1933 = vadd.f32 %v1599, %v1912
      %v1934 = vadd.f32 %v1600, %v1914
      %v1935 = vadd.f32 %v1601, %v1917
      %v1936 = vadd.f32 %v1602, %v1919
      %v1937 = vld [vmem:[%s711] sm:$0xe]
      %v1938 = vld [vmem:[%s711 + $0xc] sm:$0xe]
      %v1939 = vld [vmem:[%s711 + $0x18] sm:$0xe]
      %v1940 = vld [vmem:[%s711 + $0x24] sm:$0xe]
      %v1941 = vld [vmem:[%s711 + $0x30] sm:$0xe]
      %v1942 = vld [vmem:[%s711 + $0x3c] sm:$0xe]
      %v1943 = vld [vmem:[%s711 + $0x48] sm:$0xe]
      %v1944 = vld [vmem:[%s711 + $0x54] sm:$0xe]
      %s1945 = scalar_lea.vmem %s3, 10
      %v1946 = vld [vmem:[%s1945] sm:$0x3]
      %v1971 = vrot.slane %v1937, 5
      %v1972 = vrot.slane %v1971, 4
      %v1973 = vrot.slane %v1604, 5
      %v1974 = vsel %vm1280, %v1972, %v1973
      %v1975 = vrot.slane %v1973, 4
      %v1976 = vrot.slane %v1605, 5
      %v1977 = vsel %vm1280, %v1975, %v1976
      %v1978 = vrot.slane %v1938, 5
      %v1979 = vrot.slane %v1978, 4
      %v1980 = vrot.slane %v1607, 5
      %v1981 = vsel %vm1280, %v1979, %v1980
      %v1982 = vrot.slane %v1980, 4
      %v1983 = vrot.slane %v1608, 5
      %v1984 = vsel %vm1280, %v1982, %v1983
      %v1985 = vrot.slane %v1939, 5
      %v1986 = vrot.slane %v1985, 4
      %v1987 = vrot.slane %v1610, 5
      %v1988 = vsel %vm1280, %v1986, %v1987
      %v1989 = vrot.slane %v1987, 4
      %v1990 = vrot.slane %v1611, 5
      %v1991 = vsel %vm1280, %v1989, %v1990
      %v1992 = vrot.slane %v1940, 5
      %v1993 = vrot.slane %v1992, 4
      %v1994 = vrot.slane %v1613, 5
      %v1995 = vsel %vm1280, %v1993, %v1994
      %v1996 = vrot.slane %v1994, 4
      %v1997 = vrot.slane %v1614, 5
      %v1998 = vsel %vm1280, %v1996, %v1997
      %v1999 = vrot.slane %v1941, 5
      %v2000 = vrot.slane %v1999, 4
      %v2001 = vrot.slane %v1616, 5
      %v2002 = vsel %vm1280, %v2000, %v2001
      %v2003 = vrot.slane %v2001, 4
      %v2004 = vrot.slane %v1617, 5
      %v2005 = vsel %vm1280, %v2003, %v2004
      %v2006 = vrot.slane %v1942, 5
      %v2007 = vrot.slane %v2006, 4
      %v2008 = vrot.slane %v1619, 5
      %v2009 = vsel %vm1280, %v2007, %v2008
      %v2010 = vrot.slane %v2008, 4
      %v2011 = vrot.slane %v1620, 5
      %v2012 = vsel %vm1280, %v2010, %v2011
      %v2013 = vrot.slane %v1943, 5
      %v2014 = vrot.slane %v2013, 4
      %v2015 = vrot.slane %v1622, 5
      %v2016 = vsel %vm1280, %v2014, %v2015
      %v2017 = vrot.slane %v2015, 4
      %v2018 = vrot.slane %v1623, 5
      %v2019 = vsel %vm1280, %v2017, %v2018
      %v2020 = vrot.slane %v1944, 5
      %v2021 = vrot.slane %v2020, 4
      %v2022 = vrot.slane %v1625, 5
      %v2023 = vsel %vm1280, %v2021, %v2022
      %v2024 = vrot.slane %v2022, 4
      %v2025 = vrot.slane %v1626, 5
      %v2026 = vsel %vm1280, %v2024, %v2025
      %v2027 = vunpack.c.l.b16 %v1974
      %v2028 = vunpack.c.l.b16 %v1977
      %v2029 = vunpack.c.l.b16 %v1981
      %v2030 = vunpack.c.l.b16 %v1984
      %v2031 = vunpack.c.l.b16 %v1988
      %v2032 = vunpack.c.l.b16 %v1991
      %v2033 = vunpack.c.l.b16 %v1995
      %v2034 = vunpack.c.l.b16 %v1998
      %v2035 = vunpack.c.l.b16 %v2002
      %v2036 = vunpack.c.l.b16 %v2005
      %v2037 = vunpack.c.l.b16 %v2009
      %v2038 = vunpack.c.l.b16 %v2012
      %v2039 = vunpack.c.l.b16 %v2016
      %v2040 = vunpack.c.l.b16 %v2019
      %v2041 = vunpack.c.l.b16 %v2023
      %v2042 = vunpack.c.l.b16 %v2026
      %v2043 = vpack.c.b16 %v2028, %v2027
      %v2044 = vpack.c.b16 %v2030, %v2029
      %v2045 = vpack.c.b16 %v2032, %v2031
      %v2046 = vpack.c.b16 %v2034, %v2033
      %v2047 = vpack.c.b16 %v2036, %v2035
      %v2048 = vpack.c.b16 %v2038, %v2037
      %v2049 = vpack.c.b16 %v2040, %v2039
      %v2050 = vpack.c.b16 %v2042, %v2041
      %v2052 = vsel %vm829, %v2043, 0
      %v2055 = vsel %vm829, %v2044, 0
      %v2058 = vsel %vm829, %v2045, 0
      %v2061 = vsel %vm829, %v2046, 0
      %v2064 = vsel %vm829, %v2047, 0
      %v2067 = vsel %vm829, %v2048, 0
      %v2070 = vsel %vm829, %v2049, 0
      %v2073 = vsel %vm829, %v2050, 0
      %v2076 = vsel %vm854, %v1946, 0
      %2078 = vmatpush.bf16.msra.mxu0 0
      %2079 = vmatpush.bf16.msra.mxu0 0
      %2080 = vmatpush.bf16.msra.mxu0 0
      %2081 = vmatpush.bf16.msra.mxu0 0
      %2082 = vmatpush.bf16.msra.mxu0 0
      %2083 = vmatpush.bf16.msra.mxu0 0
      %2084 = vmatpush.bf16.msra.mxu0 0
      %2085 = vmatpush.bf16.msra.mxu0 %v2076
      %2086 = vmatmul.bf16.gmra.mxu0 %v2052
      %v2087 = vpop.f32.mrf.mxu0
      %v2088 = vadd.f32 0.0, %v2087
      %v2089 = vpop.f32.mrf.mxu0
      %v2090 = vadd.f32 0.0, %v2089
      %2091 = vmatmul.bf16.gmra.mxu0 %v2055
      %v2092 = vpop.f32.mrf.mxu0
      %v2093 = vadd.f32 0.0, %v2092
      %v2094 = vpop.f32.mrf.mxu0
      %v2095 = vadd.f32 0.0, %v2094
      %2096 = vmatmul.bf16.gmra.mxu0 %v2058
      %v2097 = vpop.f32.mrf.mxu0
      %v2098 = vadd.f32 0.0, %v2097
      %v2099 = vpop.f32.mrf.mxu0
      %v2100 = vadd.f32 0.0, %v2099
      %2101 = vmatmul.bf16.gmra.mxu0 %v2061
      %v2102 = vpop.f32.mrf.mxu0
      %v2103 = vadd.f32 0.0, %v2102
      %v2104 = vpop.f32.mrf.mxu0
      %v2105 = vadd.f32 0.0, %v2104
      %2106 = vmatmul.bf16.gmra.mxu0 %v2064
      %v2107 = vpop.f32.mrf.mxu0
      %v2108 = vadd.f32 0.0, %v2107
      %v2109 = vpop.f32.mrf.mxu0
      %v2110 = vadd.f32 0.0, %v2109
      %2111 = vmatmul.bf16.gmra.mxu0 %v2067
      %v2112 = vpop.f32.mrf.mxu0
      %v2113 = vadd.f32 0.0, %v2112
      %v2114 = vpop.f32.mrf.mxu0
      %v2115 = vadd.f32 0.0, %v2114
      %2116 = vmatmul.bf16.gmra.mxu0 %v2070
      %v2117 = vpop.f32.mrf.mxu0
      %v2118 = vadd.f32 0.0, %v2117
      %v2119 = vpop.f32.mrf.mxu0
      %v2120 = vadd.f32 0.0, %v2119
      %2121 = vmatmul.bf16.gmra.mxu0 %v2073
      %v2122 = vpop.f32.mrf.mxu0
      %v2123 = vadd.f32 0.0, %v2122
      %v2124 = vpop.f32.mrf.mxu0
      %v2125 = vadd.f32 0.0, %v2124
      %2126 = vdwg.mxu0
      %v2127 = vadd.f32 %v1921, %v2088
      %v2128 = vadd.f32 %v1922, %v2090
      %v2129 = vadd.f32 %v1923, %v2093
      %v2130 = vadd.f32 %v1924, %v2095
      %v2131 = vadd.f32 %v1925, %v2098
      %v2132 = vadd.f32 %v1926, %v2100
      %v2133 = vadd.f32 %v1927, %v2103
      %v2134 = vadd.f32 %v1928, %v2105
      %v2135 = vadd.f32 %v1929, %v2108
      %v2136 = vadd.f32 %v1930, %v2110
      %v2137 = vadd.f32 %v1931, %v2113
      %v2138 = vadd.f32 %v1932, %v2115
      %v2139 = vadd.f32 %v1933, %v2118
      %v2140 = vadd.f32 %v1934, %v2120
      %v2141 = vadd.f32 %v1935, %v2123
      %v2142 = vadd.f32 %v1936, %v2125
      %s2143 = scalar_lea.vmem [#allocation2], 24
      %v2144 = vld [vmem:[%s2143] sm:$0xf]
      %v2145 = vld [vmem:[%s2143 + $0x4] sm:$0xf]
      %v2146 = vld [vmem:[%s2143 + $0xc] sm:$0xf]
      %v2147 = vld [vmem:[%s2143 + $0x10] sm:$0xf]
      %v2148 = vld [vmem:[%s2143 + $0x18] sm:$0xf]
      %v2149 = vld [vmem:[%s2143 + $0x1c] sm:$0xf]
      %v2150 = vld [vmem:[%s2143 + $0x24] sm:$0xf]
      %v2151 = vld [vmem:[%s2143 + $0x28] sm:$0xf]
      %v2152 = vld [vmem:[%s2143 + $0x30] sm:$0xf]
      %v2153 = vld [vmem:[%s2143 + $0x34] sm:$0xf]
      %v2154 = vld [vmem:[%s2143 + $0x3c] sm:$0xf]
      %v2155 = vld [vmem:[%s2143 + $0x40] sm:$0xf]
      %v2156 = vld [vmem:[%s2143 + $0x48] sm:$0xf]
      %v2157 = vld [vmem:[%s2143 + $0x4c] sm:$0xf]
      %v2158 = vld [vmem:[%s2143 + $0x54] sm:$0xf]
      %v2159 = vld [vmem:[%s2143 + $0x58] sm:$0xf]
      %s2160 = scalar_lea.vmem %s3, 12
      %v2161 = vld [vmem:[%s2160] sm:$0x3]
      %v2178 = vunpack.c.l.b16 %v2144
      %v2179 = vunpack.c.l.b16 %v2145
      %v2180 = vunpack.c.l.b16 %v2146
      %v2181 = vunpack.c.l.b16 %v2147
      %v2182 = vunpack.c.l.b16 %v2148
      %v2183 = vunpack.c.l.b16 %v2149
      %v2184 = vunpack.c.l.b16 %v2150
      %v2185 = vunpack.c.l.b16 %v2151
      %v2186 = vunpack.c.l.b16 %v2152
      %v2187 = vunpack.c.l.b16 %v2153
      %v2188 = vunpack.c.l.b16 %v2154
      %v2189 = vunpack.c.l.b16 %v2155
      %v2190 = vunpack.c.l.b16 %v2156
      %v2191 = vunpack.c.l.b16 %v2157
      %v2192 = vunpack.c.l.b16 %v2158
      %v2193 = vunpack.c.l.b16 %v2159
      %v2194 = vpack.c.b16 %v2179, %v2178
      %v2195 = vpack.c.b16 %v2181, %v2180
      %v2196 = vpack.c.b16 %v2183, %v2182
      %v2197 = vpack.c.b16 %v2185, %v2184
      %v2198 = vpack.c.b16 %v2187, %v2186
      %v2199 = vpack.c.b16 %v2189, %v2188
      %v2200 = vpack.c.b16 %v2191, %v2190
      %v2201 = vpack.c.b16 %v2193, %v2192
      %v2203 = vsel %vm829, %v2194, 0
      %v2206 = vsel %vm829, %v2195, 0
      %v2209 = vsel %vm829, %v2196, 0
      %v2212 = vsel %vm829, %v2197, 0
      %v2215 = vsel %vm829, %v2198, 0
      %v2218 = vsel %vm829, %v2199, 0
      %v2221 = vsel %vm829, %v2200, 0
      %v2224 = vsel %vm829, %v2201, 0
      %v2227 = vsel %vm854, %v2161, 0
      %2229 = vmatpush.bf16.msra.mxu0 0
      %2230 = vmatpush.bf16.msra.mxu0 0
      %2231 = vmatpush.bf16.msra.mxu0 0
      %2232 = vmatpush.bf16.msra.mxu0 0
      %2233 = vmatpush.bf16.msra.mxu0 0
      %2234 = vmatpush.bf16.msra.mxu0 0
      %2235 = vmatpush.bf16.msra.mxu0 0
      %2236 = vmatpush.bf16.msra.mxu0 %v2227
      %2237 = vmatmul.bf16.gmra.mxu0 %v2203
      %v2238 = vpop.f32.mrf.mxu0
      %v2239 = vadd.f32 0.0, %v2238
      %v2240 = vpop.f32.mrf.mxu0
      %v2241 = vadd.f32 0.0, %v2240
      %2242 = vmatmul.bf16.gmra.mxu0 %v2206
      %v2243 = vpop.f32.mrf.mxu0
      %v2244 = vadd.f32 0.0, %v2243
      %v2245 = vpop.f32.mrf.mxu0
      %v2246 = vadd.f32 0.0, %v2245
      %2247 = vmatmul.bf16.gmra.mxu0 %v2209
      %v2248 = vpop.f32.mrf.mxu0
      %v2249 = vadd.f32 0.0, %v2248
      %v2250 = vpop.f32.mrf.mxu0
      %v2251 = vadd.f32 0.0, %v2250
      %2252 = vmatmul.bf16.gmra.mxu0 %v2212
      %v2253 = vpop.f32.mrf.mxu0
      %v2254 = vadd.f32 0.0, %v2253
      %v2255 = vpop.f32.mrf.mxu0
      %v2256 = vadd.f32 0.0, %v2255
      %2257 = vmatmul.bf16.gmra.mxu0 %v2215
      %v2258 = vpop.f32.mrf.mxu0
      %v2259 = vadd.f32 0.0, %v2258
      %v2260 = vpop.f32.mrf.mxu0
      %v2261 = vadd.f32 0.0, %v2260
      %2262 = vmatmul.bf16.gmra.mxu0 %v2218
      %v2263 = vpop.f32.mrf.mxu0
      %v2264 = vadd.f32 0.0, %v2263
      %v2265 = vpop.f32.mrf.mxu0
      %v2266 = vadd.f32 0.0, %v2265
      %2267 = vmatmul.bf16.gmra.mxu0 %v2221
      %v2268 = vpop.f32.mrf.mxu0
      %v2269 = vadd.f32 0.0, %v2268
      %v2270 = vpop.f32.mrf.mxu0
      %v2271 = vadd.f32 0.0, %v2270
      %2272 = vmatmul.bf16.gmra.mxu0 %v2224
      %v2273 = vpop.f32.mrf.mxu0
      %v2274 = vadd.f32 0.0, %v2273
      %v2275 = vpop.f32.mrf.mxu0
      %v2276 = vadd.f32 0.0, %v2275
      %2277 = vdwg.mxu0
      %v2278 = vadd.f32 %v2127, %v2239
      %v2279 = vadd.f32 %v2128, %v2241
      %v2280 = vadd.f32 %v2129, %v2244
      %v2281 = vadd.f32 %v2130, %v2246
      %v2282 = vadd.f32 %v2131, %v2249
      %v2283 = vadd.f32 %v2132, %v2251
      %v2284 = vadd.f32 %v2133, %v2254
      %v2285 = vadd.f32 %v2134, %v2256
      %v2286 = vadd.f32 %v2135, %v2259
      %v2287 = vadd.f32 %v2136, %v2261
      %v2288 = vadd.f32 %v2137, %v2264
      %v2289 = vadd.f32 %v2138, %v2266
      %v2290 = vadd.f32 %v2139, %v2269
      %v2291 = vadd.f32 %v2140, %v2271
      %v2292 = vadd.f32 %v2141, %v2274
      %v2293 = vadd.f32 %v2142, %v2276
      %v2294 = vld [vmem:[%s2143] sm:$0xf]
      %v2295 = vld [vmem:[%s2143 + $0x4] sm:$0xf]
      %v2296 = vld [vmem:[%s2143 + $0x8] sm:$0x1]
      %v2297 = vld [vmem:[%s2143 + $0xc] sm:$0xf]
      %v2298 = vld [vmem:[%s2143 + $0x10] sm:$0xf]
      %v2299 = vld [vmem:[%s2143 + $0x14] sm:$0x1]
      %v2300 = vld [vmem:[%s2143 + $0x18] sm:$0xf]
      %v2301 = vld [vmem:[%s2143 + $0x1c] sm:$0xf]
      %v2302 = vld [vmem:[%s2143 + $0x20] sm:$0x1]
      %v2303 = vld [vmem:[%s2143 + $0x24] sm:$0xf]
      %v2304 = vld [vmem:[%s2143 + $0x28] sm:$0xf]
      %v2305 = vld [vmem:[%s2143 + $0x2c] sm:$0x1]
      %v2306 = vld [vmem:[%s2143 + $0x30] sm:$0xf]
      %v2307 = vld [vmem:[%s2143 + $0x34] sm:$0xf]
      %v2308 = vld [vmem:[%s2143 + $0x38] sm:$0x1]
      %v2309 = vld [vmem:[%s2143 + $0x3c] sm:$0xf]
      %v2310 = vld [vmem:[%s2143 + $0x40] sm:$0xf]
      %v2311 = vld [vmem:[%s2143 + $0x44] sm:$0x1]
      %v2312 = vld [vmem:[%s2143 + $0x48] sm:$0xf]
      %v2313 = vld [vmem:[%s2143 + $0x4c] sm:$0xf]
      %v2314 = vld [vmem:[%s2143 + $0x50] sm:$0x1]
      %v2315 = vld [vmem:[%s2143 + $0x54] sm:$0xf]
      %v2316 = vld [vmem:[%s2143 + $0x58] sm:$0xf]
      %v2317 = vld [vmem:[%s2143 + $0x5c] sm:$0x1]
      %s2318 = scalar_lea.vmem %s3, 14
      %v2319 = vld [vmem:[%s2318] sm:$0x3]
      %v2321 = vshrl.u32 %v2294, 16
      %v2323 = vrot.slane %v2321, 4
      %v2324 = vshll.u32 %v2294, 16
      %v2326 = vrot.slane %v2324, 5
      %v2327 = vor.u32 %v2323, %v2326
      %v2328 = vrot.slane %v2327, 4
      %v2330 = vshll.u32 %v2295, 16
      %v2332 = vrot.slane %v2330, 5
      %v2333 = vsel %vm935, %v2328, %v2332
      %v2334 = vshrl.u32 %v2295, 16
      %v2336 = vrot.slane %v2334, 4
      %v2337 = vor.u32 %v2336, %v2332
      %v2338 = vrot.slane %v2337, 4
      %v2340 = vshll.u32 %v2296, 16
      %v2342 = vrot.slane %v2340, 5
      %v2343 = vsel %vm935, %v2338, %v2342
      %v2345 = vshrl.u32 %v2297, 16
      %v2347 = vrot.slane %v2345, 4
      %v2348 = vshll.u32 %v2297, 16
      %v2350 = vrot.slane %v2348, 5
      %v2351 = vor.u32 %v2347, %v2350
      %v2352 = vrot.slane %v2351, 4
      %v2354 = vshll.u32 %v2298, 16
      %v2356 = vrot.slane %v2354, 5
      %v2357 = vsel %vm935, %v2352, %v2356
      %v2358 = vshrl.u32 %v2298, 16
      %v2360 = vrot.slane %v2358, 4
      %v2361 = vor.u32 %v2360, %v2356
      %v2362 = vrot.slane %v2361, 4
      %v2364 = vshll.u32 %v2299, 16
      %v2366 = vrot.slane %v2364, 5
      %v2367 = vsel %vm935, %v2362, %v2366
      %v2369 = vshrl.u32 %v2300, 16
      %v2371 = vrot.slane %v2369, 4
      %v2372 = vshll.u32 %v2300, 16
      %v2374 = vrot.slane %v2372, 5
      %v2375 = vor.u32 %v2371, %v2374
      %v2376 = vrot.slane %v2375, 4
      %v2378 = vshll.u32 %v2301, 16
      %v2380 = vrot.slane %v2378, 5
      %v2381 = vsel %vm935, %v2376, %v2380
      %v2382 = vshrl.u32 %v2301, 16
      %v2384 = vrot.slane %v2382, 4
      %v2385 = vor.u32 %v2384, %v2380
      %v2386 = vrot.slane %v2385, 4
      %v2388 = vshll.u32 %v2302, 16
      %v2390 = vrot.slane %v2388, 5
      %v2391 = vsel %vm935, %v2386, %v2390
      %v2393 = vshrl.u32 %v2303, 16
      %v2395 = vrot.slane %v2393, 4
      %v2396 = vshll.u32 %v2303, 16
      %v2398 = vrot.slane %v2396, 5
      %v2399 = vor.u32 %v2395, %v2398
      %v2400 = vrot.slane %v2399, 4
      %v2402 = vshll.u32 %v2304, 16
      %v2404 = vrot.slane %v2402, 5
      %v2405 = vsel %vm935, %v2400, %v2404
      %v2406 = vshrl.u32 %v2304, 16
      %v2408 = vrot.slane %v2406, 4
      %v2409 = vor.u32 %v2408, %v2404
      %v2410 = vrot.slane %v2409, 4
      %v2412 = vshll.u32 %v2305, 16
      %v2414 = vrot.slane %v2412, 5
      %v2415 = vsel %vm935, %v2410, %v2414
      %v2417 = vshrl.u32 %v2306, 16
      %v2419 = vrot.slane %v2417, 4
      %v2420 = vshll.u32 %v2306, 16
      %v2422 = vrot.slane %v2420, 5
      %v2423 = vor.u32 %v2419, %v2422
      %v2424 = vrot.slane %v2423, 4
      %v2426 = vshll.u32 %v2307, 16
      %v2428 = vrot.slane %v2426, 5
      %v2429 = vsel %vm935, %v2424, %v2428
      %v2430 = vshrl.u32 %v2307, 16
      %v2432 = vrot.slane %v2430, 4
      %v2433 = vor.u32 %v2432, %v2428
      %v2434 = vrot.slane %v2433, 4
      %v2436 = vshll.u32 %v2308, 16
      %v2438 = vrot.slane %v2436, 5
      %v2439 = vsel %vm935, %v2434, %v2438
      %v2441 = vshrl.u32 %v2309, 16
      %v2443 = vrot.slane %v2441, 4
      %v2444 = vshll.u32 %v2309, 16
      %v2446 = vrot.slane %v2444, 5
      %v2447 = vor.u32 %v2443, %v2446
      %v2448 = vrot.slane %v2447, 4
      %v2450 = vshll.u32 %v2310, 16
      %v2452 = vrot.slane %v2450, 5
      %v2453 = vsel %vm935, %v2448, %v2452
      %v2454 = vshrl.u32 %v2310, 16
      %v2456 = vrot.slane %v2454, 4
      %v2457 = vor.u32 %v2456, %v2452
      %v2458 = vrot.slane %v2457, 4
      %v2460 = vshll.u32 %v2311, 16
      %v2462 = vrot.slane %v2460, 5
      %v2463 = vsel %vm935, %v2458, %v2462
      %v2465 = vshrl.u32 %v2312, 16
      %v2467 = vrot.slane %v2465, 4
      %v2468 = vshll.u32 %v2312, 16
      %v2470 = vrot.slane %v2468, 5
      %v2471 = vor.u32 %v2467, %v2470
      %v2472 = vrot.slane %v2471, 4
      %v2474 = vshll.u32 %v2313, 16
      %v2476 = vrot.slane %v2474, 5
      %v2477 = vsel %vm935, %v2472, %v2476
      %v2478 = vshrl.u32 %v2313, 16
      %v2480 = vrot.slane %v2478, 4
      %v2481 = vor.u32 %v2480, %v2476
      %v2482 = vrot.slane %v2481, 4
      %v2484 = vshll.u32 %v2314, 16
      %v2486 = vrot.slane %v2484, 5
      %v2487 = vsel %vm935, %v2482, %v2486
      %v2489 = vshrl.u32 %v2315, 16
      %v2491 = vrot.slane %v2489, 4
      %v2492 = vshll.u32 %v2315, 16
      %v2494 = vrot.slane %v2492, 5
      %v2495 = vor.u32 %v2491, %v2494
      %v2496 = vrot.slane %v2495, 4
      %v2498 = vshll.u32 %v2316, 16
      %v2500 = vrot.slane %v2498, 5
      %v2501 = vsel %vm935, %v2496, %v2500
      %v2502 = vshrl.u32 %v2316, 16
      %v2504 = vrot.slane %v2502, 4
      %v2505 = vor.u32 %v2504, %v2500
      %v2506 = vrot.slane %v2505, 4
      %v2508 = vshll.u32 %v2317, 16
      %v2510 = vrot.slane %v2508, 5
      %v2511 = vsel %vm935, %v2506, %v2510
      %v2512 = vunpack.c.l.b16 %v2333
      %v2513 = vunpack.c.l.b16 %v2343
      %v2514 = vunpack.c.l.b16 %v2357
      %v2515 = vunpack.c.l.b16 %v2367
      %v2516 = vunpack.c.l.b16 %v2381
      %v2517 = vunpack.c.l.b16 %v2391
      %v2518 = vunpack.c.l.b16 %v2405
      %v2519 = vunpack.c.l.b16 %v2415
      %v2520 = vunpack.c.l.b16 %v2429
      %v2521 = vunpack.c.l.b16 %v2439
      %v2522 = vunpack.c.l.b16 %v2453
      %v2523 = vunpack.c.l.b16 %v2463
      %v2524 = vunpack.c.l.b16 %v2477
      %v2525 = vunpack.c.l.b16 %v2487
      %v2526 = vunpack.c.l.b16 %v2501
      %v2527 = vunpack.c.l.b16 %v2511
      %v2528 = vpack.c.b16 %v2513, %v2512
      %v2529 = vpack.c.b16 %v2515, %v2514
      %v2530 = vpack.c.b16 %v2517, %v2516
      %v2531 = vpack.c.b16 %v2519, %v2518
      %v2532 = vpack.c.b16 %v2521, %v2520
      %v2533 = vpack.c.b16 %v2523, %v2522
      %v2534 = vpack.c.b16 %v2525, %v2524
      %v2535 = vpack.c.b16 %v2527, %v2526
      %v2537 = vsel %vm829, %v2528, 0
      %v2540 = vsel %vm829, %v2529, 0
      %v2543 = vsel %vm829, %v2530, 0
      %v2546 = vsel %vm829, %v2531, 0
      %v2549 = vsel %vm829, %v2532, 0
      %v2552 = vsel %vm829, %v2533, 0
      %v2555 = vsel %vm829, %v2534, 0
      %v2558 = vsel %vm829, %v2535, 0
      %v2561 = vsel %vm854, %v2319, 0
      %2563 = vmatpush.bf16.msra.mxu0 0
      %2564 = vmatpush.bf16.msra.mxu0 0
      %2565 = vmatpush.bf16.msra.mxu0 0
      %2566 = vmatpush.bf16.msra.mxu0 0
      %2567 = vmatpush.bf16.msra.mxu0 0
      %2568 = vmatpush.bf16.msra.mxu0 0
      %2569 = vmatpush.bf16.msra.mxu0 0
      %2570 = vmatpush.bf16.msra.mxu0 %v2561
      %2571 = vmatmul.bf16.gmra.mxu0 %v2537
      %v2572 = vpop.f32.mrf.mxu0
      %v2573 = vadd.f32 0.0, %v2572
      %v2574 = vpop.f32.mrf.mxu0
      %v2575 = vadd.f32 0.0, %v2574
      %2576 = vmatmul.bf16.gmra.mxu0 %v2540
      %v2577 = vpop.f32.mrf.mxu0
      %v2578 = vadd.f32 0.0, %v2577
      %v2579 = vpop.f32.mrf.mxu0
      %v2580 = vadd.f32 0.0, %v2579
      %2581 = vmatmul.bf16.gmra.mxu0 %v2543
      %v2582 = vpop.f32.mrf.mxu0
      %v2583 = vadd.f32 0.0, %v2582
      %v2584 = vpop.f32.mrf.mxu0
      %v2585 = vadd.f32 0.0, %v2584
      %2586 = vmatmul.bf16.gmra.mxu0 %v2546
      %v2587 = vpop.f32.mrf.mxu0
      %v2588 = vadd.f32 0.0, %v2587
      %v2589 = vpop.f32.mrf.mxu0
      %v2590 = vadd.f32 0.0, %v2589
      %2591 = vmatmul.bf16.gmra.mxu0 %v2549
      %v2592 = vpop.f32.mrf.mxu0
      %v2593 = vadd.f32 0.0, %v2592
      %v2594 = vpop.f32.mrf.mxu0
      %v2595 = vadd.f32 0.0, %v2594
      %2596 = vmatmul.bf16.gmra.mxu0 %v2552
      %v2597 = vpop.f32.mrf.mxu0
      %v2598 = vadd.f32 0.0, %v2597
      %v2599 = vpop.f32.mrf.mxu0
      %v2600 = vadd.f32 0.0, %v2599
      %2601 = vmatmul.bf16.gmra.mxu0 %v2555
      %v2602 = vpop.f32.mrf.mxu0
      %v2603 = vadd.f32 0.0, %v2602
      %v2604 = vpop.f32.mrf.mxu0
      %v2605 = vadd.f32 0.0, %v2604
      %2606 = vmatmul.bf16.gmra.mxu0 %v2558
      %v2607 = vpop.f32.mrf.mxu0
      %v2608 = vadd.f32 0.0, %v2607
      %v2609 = vpop.f32.mrf.mxu0
      %v2610 = vadd.f32 0.0, %v2609
      %2611 = vdwg.mxu0
      %v2612 = vadd.f32 %v2278, %v2573
      %v2613 = vadd.f32 %v2279, %v2575
      %v2614 = vadd.f32 %v2280, %v2578
      %v2615 = vadd.f32 %v2281, %v2580
      %v2616 = vadd.f32 %v2282, %v2583
      %v2617 = vadd.f32 %v2283, %v2585
      %v2618 = vadd.f32 %v2284, %v2588
      %v2619 = vadd.f32 %v2285, %v2590
      %v2620 = vadd.f32 %v2286, %v2593
      %v2621 = vadd.f32 %v2287, %v2595
      %v2622 = vadd.f32 %v2288, %v2598
      %v2623 = vadd.f32 %v2289, %v2600
      %v2624 = vadd.f32 %v2290, %v2603
      %v2625 = vadd.f32 %v2291, %v2605
      %v2626 = vadd.f32 %v2292, %v2608
      %v2627 = vadd.f32 %v2293, %v2610
      %v2628 = vld [vmem:[%s2143] sm:$0xe]
      %v2629 = vld [vmem:[%s2143 + $0xc] sm:$0xe]
      %v2630 = vld [vmem:[%s2143 + $0x18] sm:$0xe]
      %v2631 = vld [vmem:[%s2143 + $0x24] sm:$0xe]
      %v2632 = vld [vmem:[%s2143 + $0x30] sm:$0xe]
      %v2633 = vld [vmem:[%s2143 + $0x3c] sm:$0xe]
      %v2634 = vld [vmem:[%s2143 + $0x48] sm:$0xe]
      %v2635 = vld [vmem:[%s2143 + $0x54] sm:$0xe]
      %s2636 = scalar_lea.vmem %s3, 16
      %v2637 = vld [vmem:[%s2636] sm:$0x3]
      %v2662 = vrot.slane %v2628, 5
      %v2663 = vrot.slane %v2662, 4
      %v2664 = vrot.slane %v2295, 5
      %v2665 = vsel %vm1280, %v2663, %v2664
      %v2666 = vrot.slane %v2664, 4
      %v2667 = vrot.slane %v2296, 5
      %v2668 = vsel %vm1280, %v2666, %v2667
      %v2669 = vrot.slane %v2629, 5
      %v2670 = vrot.slane %v2669, 4
      %v2671 = vrot.slane %v2298, 5
      %v2672 = vsel %vm1280, %v2670, %v2671
      %v2673 = vrot.slane %v2671, 4
      %v2674 = vrot.slane %v2299, 5
      %v2675 = vsel %vm1280, %v2673, %v2674
      %v2676 = vrot.slane %v2630, 5
      %v2677 = vrot.slane %v2676, 4
      %v2678 = vrot.slane %v2301, 5
      %v2679 = vsel %vm1280, %v2677, %v2678
      %v2680 = vrot.slane %v2678, 4
      %v2681 = vrot.slane %v2302, 5
      %v2682 = vsel %vm1280, %v2680, %v2681
      %v2683 = vrot.slane %v2631, 5
      %v2684 = vrot.slane %v2683, 4
      %v2685 = vrot.slane %v2304, 5
      %v2686 = vsel %vm1280, %v2684, %v2685
      %v2687 = vrot.slane %v2685, 4
      %v2688 = vrot.slane %v2305, 5
      %v2689 = vsel %vm1280, %v2687, %v2688
      %v2690 = vrot.slane %v2632, 5
      %v2691 = vrot.slane %v2690, 4
      %v2692 = vrot.slane %v2307, 5
      %v2693 = vsel %vm1280, %v2691, %v2692
      %v2694 = vrot.slane %v2692, 4
      %v2695 = vrot.slane %v2308, 5
      %v2696 = vsel %vm1280, %v2694, %v2695
      %v2697 = vrot.slane %v2633, 5
      %v2698 = vrot.slane %v2697, 4
      %v2699 = vrot.slane %v2310, 5
      %v2700 = vsel %vm1280, %v2698, %v2699
      %v2701 = vrot.slane %v2699, 4
      %v2702 = vrot.slane %v2311, 5
      %v2703 = vsel %vm1280, %v2701, %v2702
      %v2704 = vrot.slane %v2634, 5
      %v2705 = vrot.slane %v2704, 4
      %v2706 = vrot.slane %v2313, 5
      %v2707 = vsel %vm1280, %v2705, %v2706
      %v2708 = vrot.slane %v2706, 4
      %v2709 = vrot.slane %v2314, 5
      %v2710 = vsel %vm1280, %v2708, %v2709
      %v2711 = vrot.slane %v2635, 5
      %v2712 = vrot.slane %v2711, 4
      %v2713 = vrot.slane %v2316, 5
      %v2714 = vsel %vm1280, %v2712, %v2713
      %v2715 = vrot.slane %v2713, 4
      %v2716 = vrot.slane %v2317, 5
      %v2717 = vsel %vm1280, %v2715, %v2716
      %v2718 = vunpack.c.l.b16 %v2665
      %v2719 = vunpack.c.l.b16 %v2668
      %v2720 = vunpack.c.l.b16 %v2672
      %v2721 = vunpack.c.l.b16 %v2675
      %v2722 = vunpack.c.l.b16 %v2679
      %v2723 = vunpack.c.l.b16 %v2682
      %v2724 = vunpack.c.l.b16 %v2686
      %v2725 = vunpack.c.l.b16 %v2689
      %v2726 = vunpack.c.l.b16 %v2693
      %v2727 = vunpack.c.l.b16 %v2696
      %v2728 = vunpack.c.l.b16 %v2700
      %v2729 = vunpack.c.l.b16 %v2703
      %v2730 = vunpack.c.l.b16 %v2707
      %v2731 = vunpack.c.l.b16 %v2710
      %v2732 = vunpack.c.l.b16 %v2714
      %v2733 = vunpack.c.l.b16 %v2717
      %v2734 = vpack.c.b16 %v2719, %v2718
      %v2735 = vpack.c.b16 %v2721, %v2720
      %v2736 = vpack.c.b16 %v2723, %v2722
      %v2737 = vpack.c.b16 %v2725, %v2724
      %v2738 = vpack.c.b16 %v2727, %v2726
      %v2739 = vpack.c.b16 %v2729, %v2728
      %v2740 = vpack.c.b16 %v2731, %v2730
      %v2741 = vpack.c.b16 %v2733, %v2732
      %v2743 = vsel %vm829, %v2734, 0
      %v2746 = vsel %vm829, %v2735, 0
      %v2749 = vsel %vm829, %v2736, 0
      %v2752 = vsel %vm829, %v2737, 0
      %v2755 = vsel %vm829, %v2738, 0
      %v2758 = vsel %vm829, %v2739, 0
      %v2761 = vsel %vm829, %v2740, 0
      %v2764 = vsel %vm829, %v2741, 0
      %v2767 = vsel %vm854, %v2637, 0
      %2769 = vmatpush.bf16.msra.mxu0 0
      %2770 = vmatpush.bf16.msra.mxu0 0
      %2771 = vmatpush.bf16.msra.mxu0 0
      %2772 = vmatpush.bf16.msra.mxu0 0
      %2773 = vmatpush.bf16.msra.mxu0 0
      %2774 = vmatpush.bf16.msra.mxu0 0
      %2775 = vmatpush.bf16.msra.mxu0 0
      %2776 = vmatpush.bf16.msra.mxu0 %v2767
      %2777 = vmatmul.bf16.gmra.mxu0 %v2743
      %v2778 = vpop.f32.mrf.mxu0
      %v2779 = vadd.f32 0.0, %v2778
      %v2780 = vpop.f32.mrf.mxu0
      %v2781 = vadd.f32 0.0, %v2780
      %2782 = vmatmul.bf16.gmra.mxu0 %v2746
      %v2783 = vpop.f32.mrf.mxu0
      %v2784 = vadd.f32 0.0, %v2783
      %v2785 = vpop.f32.mrf.mxu0
      %v2786 = vadd.f32 0.0, %v2785
      %2787 = vmatmul.bf16.gmra.mxu0 %v2749
      %v2788 = vpop.f32.mrf.mxu0
      %v2789 = vadd.f32 0.0, %v2788
      %v2790 = vpop.f32.mrf.mxu0
      %v2791 = vadd.f32 0.0, %v2790
      %2792 = vmatmul.bf16.gmra.mxu0 %v2752
      %v2793 = vpop.f32.mrf.mxu0
      %v2794 = vadd.f32 0.0, %v2793
      %v2795 = vpop.f32.mrf.mxu0
      %v2796 = vadd.f32 0.0, %v2795
      %2797 = vmatmul.bf16.gmra.mxu0 %v2755
      %v2798 = vpop.f32.mrf.mxu0
      %v2799 = vadd.f32 0.0, %v2798
      %v2800 = vpop.f32.mrf.mxu0
      %v2801 = vadd.f32 0.0, %v2800
      %2802 = vmatmul.bf16.gmra.mxu0 %v2758
      %v2803 = vpop.f32.mrf.mxu0
      %v2804 = vadd.f32 0.0, %v2803
      %v2805 = vpop.f32.mrf.mxu0
      %v2806 = vadd.f32 0.0, %v2805
      %2807 = vmatmul.bf16.gmra.mxu0 %v2761
      %v2808 = vpop.f32.mrf.mxu0
      %v2809 = vadd.f32 0.0, %v2808
      %v2810 = vpop.f32.mrf.mxu0
      %v2811 = vadd.f32 0.0, %v2810
      %2812 = vmatmul.bf16.gmra.mxu0 %v2764
      %v2813 = vpop.f32.mrf.mxu0
      %v2814 = vadd.f32 0.0, %v2813
      %v2815 = vpop.f32.mrf.mxu0
      %v2816 = vadd.f32 0.0, %v2815
      %2817 = vdwg.mxu0
      %v2818 = vadd.f32 %v2612, %v2779
      %v2819 = vadd.f32 %v2613, %v2781
      %v2820 = vadd.f32 %v2614, %v2784
      %v2821 = vadd.f32 %v2615, %v2786
      %v2822 = vadd.f32 %v2616, %v2789
      %v2823 = vadd.f32 %v2617, %v2791
      %v2824 = vadd.f32 %v2618, %v2794
      %v2825 = vadd.f32 %v2619, %v2796
      %v2826 = vadd.f32 %v2620, %v2799
      %v2827 = vadd.f32 %v2621, %v2801
      %v2828 = vadd.f32 %v2622, %v2804
      %v2829 = vadd.f32 %v2623, %v2806
      %v2830 = vadd.f32 %v2624, %v2809
      %v2831 = vadd.f32 %v2625, %v2811
      %v2832 = vadd.f32 %v2626, %v2814
      %v2833 = vadd.f32 %v2627, %v2816
      %v2834 = vmin.f32 %v2818, 20.0
      %v2835 = vmin.f32 %v2819, 20.0
      %v2836 = vmin.f32 %v2820, 20.0
      %v2837 = vmin.f32 %v2821, 20.0
      %v2838 = vmin.f32 %v2822, 20.0
      %v2839 = vmin.f32 %v2823, 20.0
      %v2840 = vmin.f32 %v2824, 20.0
      %v2841 = vmin.f32 %v2825, 20.0
      %v2842 = vmin.f32 %v2826, 20.0
      %v2843 = vmin.f32 %v2827, 20.0
      %v2844 = vmin.f32 %v2828, 20.0
      %v2845 = vmin.f32 %v2829, 20.0
      %v2846 = vmin.f32 %v2830, 20.0
      %v2847 = vmin.f32 %v2831, 20.0
      %v2848 = vmin.f32 %v2832, 20.0
      %v2849 = vmin.f32 %v2833, 20.0
      %v2850 = vmul.f32 %v2834, 1.442695
      %v2851 = vpow.pop %v2850
      %v2852 = vmul.f32 %v2835, 1.442695
      %v2853 = vpow.pop %v2852
      %v2854 = vmul.f32 %v2836, 1.442695
      %v2855 = vpow.pop %v2854
      %v2856 = vmul.f32 %v2837, 1.442695
      %v2857 = vpow.pop %v2856
      %v2858 = vmul.f32 %v2838, 1.442695
      %v2859 = vpow.pop %v2858
      %v2860 = vmul.f32 %v2839, 1.442695
      %v2861 = vpow.pop %v2860
      %v2862 = vmul.f32 %v2840, 1.442695
      %v2863 = vpow.pop %v2862
      %v2864 = vmul.f32 %v2841, 1.442695
      %v2865 = vpow.pop %v2864
      %v2866 = vmul.f32 %v2842, 1.442695
      %v2867 = vpow.pop %v2866
      %v2868 = vmul.f32 %v2843, 1.442695
      %v2869 = vpow.pop %v2868
      %v2870 = vmul.f32 %v2844, 1.442695
      %v2871 = vpow.pop %v2870
      %v2872 = vmul.f32 %v2845, 1.442695
      %v2873 = vpow.pop %v2872
      %v2874 = vmul.f32 %v2846, 1.442695
      %v2875 = vpow.pop %v2874
      %v2876 = vmul.f32 %v2847, 1.442695
      %v2877 = vpow.pop %v2876
      %v2878 = vmul.f32 %v2848, 1.442695
      %v2879 = vpow.pop %v2878
      %v2880 = vmul.f32 %v2849, 1.442695
      %v2881 = vpow.pop %v2880
      %v2882 = vadd.f32 %v2851, 2.0
      %v2883 = vadd.f32 %v2853, 2.0
      %v2884 = vadd.f32 %v2855, 2.0
      %v2885 = vadd.f32 %v2857, 2.0
      %v2886 = vadd.f32 %v2859, 2.0
      %v2887 = vadd.f32 %v2861, 2.0
      %v2888 = vadd.f32 %v2863, 2.0
      %v2889 = vadd.f32 %v2865, 2.0
      %v2890 = vadd.f32 %v2867, 2.0
      %v2891 = vadd.f32 %v2869, 2.0
      %v2892 = vadd.f32 %v2871, 2.0
      %v2893 = vadd.f32 %v2873, 2.0
      %v2894 = vadd.f32 %v2875, 2.0
      %v2895 = vadd.f32 %v2877, 2.0
      %v2896 = vadd.f32 %v2879, 2.0
      %v2897 = vadd.f32 %v2881, 2.0
      %v2898 = vmul.f32 %v2851, %v2882
      %v2899 = vmul.f32 %v2853, %v2883
      %v2900 = vmul.f32 %v2855, %v2884
      %v2901 = vmul.f32 %v2857, %v2885
      %v2902 = vmul.f32 %v2859, %v2886
      %v2903 = vmul.f32 %v2861, %v2887
      %v2904 = vmul.f32 %v2863, %v2888
      %v2905 = vmul.f32 %v2865, %v2889
      %v2906 = vmul.f32 %v2867, %v2890
      %v2907 = vmul.f32 %v2869, %v2891
      %v2908 = vmul.f32 %v2871, %v2892
      %v2909 = vmul.f32 %v2873, %v2893
      %v2910 = vmul.f32 %v2875, %v2894
      %v2911 = vmul.f32 %v2877, %v2895
      %v2912 = vmul.f32 %v2879, %v2896
      %v2913 = vmul.f32 %v2881, %v2897
      %v2914 = vadd.f32 %v2898, 2.0
      %v2915 = vadd.f32 %v2899, 2.0
      %v2916 = vadd.f32 %v2900, 2.0
      %v2917 = vadd.f32 %v2901, 2.0
      %v2918 = vadd.f32 %v2902, 2.0
      %v2919 = vadd.f32 %v2903, 2.0
      %v2920 = vadd.f32 %v2904, 2.0
      %v2921 = vadd.f32 %v2905, 2.0
      %v2922 = vadd.f32 %v2906, 2.0
      %v2923 = vadd.f32 %v2907, 2.0
      %v2924 = vadd.f32 %v2908, 2.0
      %v2925 = vadd.f32 %v2909, 2.0
      %v2926 = vadd.f32 %v2910, 2.0
      %v2927 = vadd.f32 %v2911, 2.0
      %v2928 = vadd.f32 %v2912, 2.0
      %v2929 = vadd.f32 %v2913, 2.0
      %v2930 = vrcp.pop %v2914
      %v2931 = vmul.f32 %v2914, %v2930
      %v2932 = vsub.f32 1.0, %v2931
      %v2933 = vmul.f32 %v2930, %v2932
      %v2934 = vadd.f32 %v2930, %v2933
      %vm2935 = vweird.f32 %v2914
      %vm2936 = vweird.f32 %v2930
      %vm2937 = vmor %vm2935, %vm2936
      %v2938 = vsel %vm2937, %v2930, %v2934
      %v2939 = vand.u32 2147483647, %v2914
      %vm2940 = vcmp.eq.f32.partialorder %v2939, 8.507059e+37
      %v2941 = vand.u32 %v2914, 2147483648
      %v2942 = vor.u32 1.1754944e-38, %v2941
      %v2943 = vsel %vm2940, %v2942, %v2938
      %v2944 = vmul.f32 %v2898, %v2943
      %v2945 = vrcp.pop %v2915
      %v2946 = vmul.f32 %v2915, %v2945
      %v2947 = vsub.f32 1.0, %v2946
      %v2948 = vmul.f32 %v2945, %v2947
      %v2949 = vadd.f32 %v2945, %v2948
      %vm2950 = vweird.f32 %v2915
      %vm2951 = vweird.f32 %v2945
      %vm2952 = vmor %vm2950, %vm2951
      %v2953 = vsel %vm2952, %v2945, %v2949
      %v2954 = vand.u32 2147483647, %v2915
      %vm2955 = vcmp.eq.f32.partialorder %v2954, 8.507059e+37
      %v2956 = vand.u32 %v2915, 2147483648
      %v2957 = vor.u32 1.1754944e-38, %v2956
      %v2958 = vsel %vm2955, %v2957, %v2953
      %v2959 = vmul.f32 %v2899, %v2958
      %v2960 = vrcp.pop %v2916
      %v2961 = vmul.f32 %v2916, %v2960
      %v2962 = vsub.f32 1.0, %v2961
      %v2963 = vmul.f32 %v2960, %v2962
      %v2964 = vadd.f32 %v2960, %v2963
      %vm2965 = vweird.f32 %v2916
      %vm2966 = vweird.f32 %v2960
      %vm2967 = vmor %vm2965, %vm2966
      %v2968 = vsel %vm2967, %v2960, %v2964
      %v2969 = vand.u32 2147483647, %v2916
      %vm2970 = vcmp.eq.f32.partialorder %v2969, 8.507059e+37
      %v2971 = vand.u32 %v2916, 2147483648
      %v2972 = vor.u32 1.1754944e-38, %v2971
      %v2973 = vsel %vm2970, %v2972, %v2968
      %v2974 = vmul.f32 %v2900, %v2973
      %v2975 = vrcp.pop %v2917
      %v2976 = vmul.f32 %v2917, %v2975
      %v2977 = vsub.f32 1.0, %v2976
      %v2978 = vmul.f32 %v2975, %v2977
      %v2979 = vadd.f32 %v2975, %v2978
      %vm2980 = vweird.f32 %v2917
      %vm2981 = vweird.f32 %v2975
      %vm2982 = vmor %vm2980, %vm2981
      %v2983 = vsel %vm2982, %v2975, %v2979
      %v2984 = vand.u32 2147483647, %v2917
      %vm2985 = vcmp.eq.f32.partialorder %v2984, 8.507059e+37
      %v2986 = vand.u32 %v2917, 2147483648
      %v2987 = vor.u32 1.1754944e-38, %v2986
      %v2988 = vsel %vm2985, %v2987, %v2983
      %v2989 = vmul.f32 %v2901, %v2988
      %v2990 = vrcp.pop %v2918
      %v2991 = vmul.f32 %v2918, %v2990
      %v2992 = vsub.f32 1.0, %v2991
      %v2993 = vmul.f32 %v2990, %v2992
      %v2994 = vadd.f32 %v2990, %v2993
      %vm2995 = vweird.f32 %v2918
      %vm2996 = vweird.f32 %v2990
      %vm2997 = vmor %vm2995, %vm2996
      %v2998 = vsel %vm2997, %v2990, %v2994
      %v2999 = vand.u32 2147483647, %v2918
      %vm3000 = vcmp.eq.f32.partialorder %v2999, 8.507059e+37
      %v3001 = vand.u32 %v2918, 2147483648
      %v3002 = vor.u32 1.1754944e-38, %v3001
      %v3003 = vsel %vm3000, %v3002, %v2998
      %v3004 = vmul.f32 %v2902, %v3003
      %v3005 = vrcp.pop %v2919
      %v3006 = vmul.f32 %v2919, %v3005
      %v3007 = vsub.f32 1.0, %v3006
      %v3008 = vmul.f32 %v3005, %v3007
      %v3009 = vadd.f32 %v3005, %v3008
      %vm3010 = vweird.f32 %v2919
      %vm3011 = vweird.f32 %v3005
      %vm3012 = vmor %vm3010, %vm3011
      %v3013 = vsel %vm3012, %v3005, %v3009
      %v3014 = vand.u32 2147483647, %v2919
      %vm3015 = vcmp.eq.f32.partialorder %v3014, 8.507059e+37
      %v3016 = vand.u32 %v2919, 2147483648
      %v3017 = vor.u32 1.1754944e-38, %v3016
      %v3018 = vsel %vm3015, %v3017, %v3013
      %v3019 = vmul.f32 %v2903, %v3018
      %v3020 = vrcp.pop %v2920
      %v3021 = vmul.f32 %v2920, %v3020
      %v3022 = vsub.f32 1.0, %v3021
      %v3023 = vmul.f32 %v3020, %v3022
      %v3024 = vadd.f32 %v3020, %v3023
      %vm3025 = vweird.f32 %v2920
      %vm3026 = vweird.f32 %v3020
      %vm3027 = vmor %vm3025, %vm3026
      %v3028 = vsel %vm3027, %v3020, %v3024
      %v3029 = vand.u32 2147483647, %v2920
      %vm3030 = vcmp.eq.f32.partialorder %v3029, 8.507059e+37
      %v3031 = vand.u32 %v2920, 2147483648
      %v3032 = vor.u32 1.1754944e-38, %v3031
      %v3033 = vsel %vm3030, %v3032, %v3028
      %v3034 = vmul.f32 %v2904, %v3033
      %v3035 = vrcp.pop %v2921
      %v3036 = vmul.f32 %v2921, %v3035
      %v3037 = vsub.f32 1.0, %v3036
      %v3038 = vmul.f32 %v3035, %v3037
      %v3039 = vadd.f32 %v3035, %v3038
      %vm3040 = vweird.f32 %v2921
      %vm3041 = vweird.f32 %v3035
      %vm3042 = vmor %vm3040, %vm3041
      %v3043 = vsel %vm3042, %v3035, %v3039
      %v3044 = vand.u32 2147483647, %v2921
      %vm3045 = vcmp.eq.f32.partialorder %v3044, 8.507059e+37
      %v3046 = vand.u32 %v2921, 2147483648
      %v3047 = vor.u32 1.1754944e-38, %v3046
      %v3048 = vsel %vm3045, %v3047, %v3043
      %v3049 = vmul.f32 %v2905, %v3048
      %v3050 = vrcp.pop %v2922
      %v3051 = vmul.f32 %v2922, %v3050
      %v3052 = vsub.f32 1.0, %v3051
      %v3053 = vmul.f32 %v3050, %v3052
      %v3054 = vadd.f32 %v3050, %v3053
      %vm3055 = vweird.f32 %v2922
      %vm3056 = vweird.f32 %v3050
      %vm3057 = vmor %vm3055, %vm3056
      %v3058 = vsel %vm3057, %v3050, %v3054
      %v3059 = vand.u32 2147483647, %v2922
      %vm3060 = vcmp.eq.f32.partialorder %v3059, 8.507059e+37
      %v3061 = vand.u32 %v2922, 2147483648
      %v3062 = vor.u32 1.1754944e-38, %v3061
      %v3063 = vsel %vm3060, %v3062, %v3058
      %v3064 = vmul.f32 %v2906, %v3063
      %v3065 = vrcp.pop %v2923
      %v3066 = vmul.f32 %v2923, %v3065
      %v3067 = vsub.f32 1.0, %v3066
      %v3068 = vmul.f32 %v3065, %v3067
      %v3069 = vadd.f32 %v3065, %v3068
      %vm3070 = vweird.f32 %v2923
      %vm3071 = vweird.f32 %v3065
      %vm3072 = vmor %vm3070, %vm3071
      %v3073 = vsel %vm3072, %v3065, %v3069
      %v3074 = vand.u32 2147483647, %v2923
      %vm3075 = vcmp.eq.f32.partialorder %v3074, 8.507059e+37
      %v3076 = vand.u32 %v2923, 2147483648
      %v3077 = vor.u32 1.1754944e-38, %v3076
      %v3078 = vsel %vm3075, %v3077, %v3073
      %v3079 = vmul.f32 %v2907, %v3078
      %v3080 = vrcp.pop %v2924
      %v3081 = vmul.f32 %v2924, %v3080
      %v3082 = vsub.f32 1.0, %v3081
      %v3083 = vmul.f32 %v3080, %v3082
      %v3084 = vadd.f32 %v3080, %v3083
      %vm3085 = vweird.f32 %v2924
      %vm3086 = vweird.f32 %v3080
      %vm3087 = vmor %vm3085, %vm3086
      %v3088 = vsel %vm3087, %v3080, %v3084
      %v3089 = vand.u32 2147483647, %v2924
      %vm3090 = vcmp.eq.f32.partialorder %v3089, 8.507059e+37
      %v3091 = vand.u32 %v2924, 2147483648
      %v3092 = vor.u32 1.1754944e-38, %v3091
      %v3093 = vsel %vm3090, %v3092, %v3088
      %v3094 = vmul.f32 %v2908, %v3093
      %v3095 = vrcp.pop %v2925
      %v3096 = vmul.f32 %v2925, %v3095
      %v3097 = vsub.f32 1.0, %v3096
      %v3098 = vmul.f32 %v3095, %v3097
      %v3099 = vadd.f32 %v3095, %v3098
      %vm3100 = vweird.f32 %v2925
      %vm3101 = vweird.f32 %v3095
      %vm3102 = vmor %vm3100, %vm3101
      %v3103 = vsel %vm3102, %v3095, %v3099
      %v3104 = vand.u32 2147483647, %v2925
      %vm3105 = vcmp.eq.f32.partialorder %v3104, 8.507059e+37
      %v3106 = vand.u32 %v2925, 2147483648
      %v3107 = vor.u32 1.1754944e-38, %v3106
      %v3108 = vsel %vm3105, %v3107, %v3103
      %v3109 = vmul.f32 %v2909, %v3108
      %v3110 = vrcp.pop %v2926
      %v3111 = vmul.f32 %v2926, %v3110
      %v3112 = vsub.f32 1.0, %v3111
      %v3113 = vmul.f32 %v3110, %v3112
      %v3114 = vadd.f32 %v3110, %v3113
      %vm3115 = vweird.f32 %v2926
      %vm3116 = vweird.f32 %v3110
      %vm3117 = vmor %vm3115, %vm3116
      %v3118 = vsel %vm3117, %v3110, %v3114
      %v3119 = vand.u32 2147483647, %v2926
      %vm3120 = vcmp.eq.f32.partialorder %v3119, 8.507059e+37
      %v3121 = vand.u32 %v2926, 2147483648
      %v3122 = vor.u32 1.1754944e-38, %v3121
      %v3123 = vsel %vm3120, %v3122, %v3118
      %v3124 = vmul.f32 %v2910, %v3123
      %v3125 = vrcp.pop %v2927
      %v3126 = vmul.f32 %v2927, %v3125
      %v3127 = vsub.f32 1.0, %v3126
      %v3128 = vmul.f32 %v3125, %v3127
      %v3129 = vadd.f32 %v3125, %v3128
      %vm3130 = vweird.f32 %v2927
      %vm3131 = vweird.f32 %v3125
      %vm3132 = vmor %vm3130, %vm3131
      %v3133 = vsel %vm3132, %v3125, %v3129
      %v3134 = vand.u32 2147483647, %v2927
      %vm3135 = vcmp.eq.f32.partialorder %v3134, 8.507059e+37
      %v3136 = vand.u32 %v2927, 2147483648
      %v3137 = vor.u32 1.1754944e-38, %v3136
      %v3138 = vsel %vm3135, %v3137, %v3133
      %v3139 = vmul.f32 %v2911, %v3138
      %v3140 = vrcp.pop %v2928
      %v3141 = vmul.f32 %v2928, %v3140
      %v3142 = vsub.f32 1.0, %v3141
      %v3143 = vmul.f32 %v3140, %v3142
      %v3144 = vadd.f32 %v3140, %v3143
      %vm3145 = vweird.f32 %v2928
      %vm3146 = vweird.f32 %v3140
      %vm3147 = vmor %vm3145, %vm3146
      %v3148 = vsel %vm3147, %v3140, %v3144
      %v3149 = vand.u32 2147483647, %v2928
      %vm3150 = vcmp.eq.f32.partialorder %v3149, 8.507059e+37
      %v3151 = vand.u32 %v2928, 2147483648
      %v3152 = vor.u32 1.1754944e-38, %v3151
      %v3153 = vsel %vm3150, %v3152, %v3148
      %v3154 = vmul.f32 %v2912, %v3153
      %v3155 = vrcp.pop %v2929
      %v3156 = vmul.f32 %v2929, %v3155
      %v3157 = vsub.f32 1.0, %v3156
      %v3158 = vmul.f32 %v3155, %v3157
      %v3159 = vadd.f32 %v3155, %v3158
      %vm3160 = vweird.f32 %v2929
      %vm3161 = vweird.f32 %v3155
      %vm3162 = vmor %vm3160, %vm3161
      %v3163 = vsel %vm3162, %v3155, %v3159
      %v3164 = vand.u32 2147483647, %v2929
      %vm3165 = vcmp.eq.f32.partialorder %v3164, 8.507059e+37
      %v3166 = vand.u32 %v2929, 2147483648
      %v3167 = vor.u32 1.1754944e-38, %v3166
      %v3168 = vsel %vm3165, %v3167, %v3163
      %v3169 = vmul.f32 %v2913, %v3168
      %v3170 = vmul.f32 %v2818, %v2944
      %v3171 = vmul.f32 %v2819, %v2959
      %v3172 = vmul.f32 %v2820, %v2974
      %v3173 = vmul.f32 %v2821, %v2989
      %v3174 = vmul.f32 %v2822, %v3004
      %v3175 = vmul.f32 %v2823, %v3019
      %v3176 = vmul.f32 %v2824, %v3034
      %v3177 = vmul.f32 %v2825, %v3049
      %v3178 = vmul.f32 %v2826, %v3064
      %v3179 = vmul.f32 %v2827, %v3079
      %v3180 = vmul.f32 %v2828, %v3094
      %v3181 = vmul.f32 %v2829, %v3109
      %v3182 = vmul.f32 %v2830, %v3124
      %v3183 = vmul.f32 %v2831, %v3139
      %v3184 = vmul.f32 %v2832, %v3154
      %v3185 = vmul.f32 %v2833, %v3169
      %vm3186 = vcmask 64512
      %3187 = vst.msk [vmem:[%s391] sm:$0xff] %vm3186, %v3170
      %3188 = vst.msk [vmem:[%s391 + $0x8] sm:$0xff] %vm3186, %v3171
      %3189 = vst.msk [vmem:[%s391 + $0x20] sm:$0xff] %vm3186, %v3172
      %3190 = vst.msk [vmem:[%s391 + $0x28] sm:$0xff] %vm3186, %v3173
      %3191 = vst.msk [vmem:[%s391 + $0x40] sm:$0xff] %vm3186, %v3174
      %3192 = vst.msk [vmem:[%s391 + $0x48] sm:$0xff] %vm3186, %v3175
      %3193 = vst.msk [vmem:[%s391 + $0x60] sm:$0xff] %vm3186, %v3176
      %3194 = vst.msk [vmem:[%s391 + $0x68] sm:$0xff] %vm3186, %v3177
      %3195 = vst.msk [vmem:[%s391 + $0x80] sm:$0xff] %vm3186, %v3178
      %3196 = vst.msk [vmem:[%s391 + $0x88] sm:$0xff] %vm3186, %v3179
      %3197 = vst.msk [vmem:[%s391 + $0xa0] sm:$0xff] %vm3186, %v3180
      %3198 = vst.msk [vmem:[%s391 + $0xa8] sm:$0xff] %vm3186, %v3181
      %3199 = vst.msk [vmem:[%s391 + $0xc0] sm:$0xff] %vm3186, %v3182
      %3200 = vst.msk [vmem:[%s391 + $0xc8] sm:$0xff] %vm3186, %v3183
      %3201 = vst.msk [vmem:[%s391 + $0xe0] sm:$0xff] %vm3186, %v3184
      %3202 = vst.msk [vmem:[%s391 + $0xe8] sm:$0xff] %vm3186, %v3185
      %3219 = vrot.lane.b32.xlu0 %v3170, 120
      %v3220 = vpop.permute.xlu0 %3219
      %3221 = vrot.lane.b32.xlu0 %v3171, 120
      %v3222 = vpop.permute.xlu0 %3221
      %3223 = vrot.lane.b32.xlu0 %v3172, 120
      %v3224 = vpop.permute.xlu0 %3223
      %3225 = vrot.lane.b32.xlu0 %v3173, 120
      %v3226 = vpop.permute.xlu0 %3225
      %3227 = vrot.lane.b32.xlu0 %v3174, 120
      %v3228 = vpop.permute.xlu0 %3227
      %3229 = vrot.lane.b32.xlu0 %v3175, 120
      %v3230 = vpop.permute.xlu0 %3229
      %3231 = vrot.lane.b32.xlu0 %v3176, 120
      %v3232 = vpop.permute.xlu0 %3231
      %3233 = vrot.lane.b32.xlu0 %v3177, 120
      %v3234 = vpop.permute.xlu0 %3233
      %3235 = vrot.lane.b32.xlu0 %v3178, 120
      %v3236 = vpop.permute.xlu0 %3235
      %3237 = vrot.lane.b32.xlu0 %v3179, 120
      %v3238 = vpop.permute.xlu0 %3237
      %3239 = vrot.lane.b32.xlu0 %v3180, 120
      %v3240 = vpop.permute.xlu0 %3239
      %3241 = vrot.lane.b32.xlu0 %v3181, 120
      %v3242 = vpop.permute.xlu0 %3241
      %3243 = vrot.lane.b32.xlu0 %v3182, 120
      %v3244 = vpop.permute.xlu0 %3243
      %3245 = vrot.lane.b32.xlu0 %v3183, 120
      %v3246 = vpop.permute.xlu0 %3245
      %3247 = vrot.lane.b32.xlu0 %v3184, 120
      %v3248 = vpop.permute.xlu0 %3247
      %3249 = vrot.lane.b32.xlu0 %v3185, 120
      %v3250 = vpop.permute.xlu0 %3249
      %s3267 = scalar_lea.vmem %s391, 16
      %3268 = vst.msk [vmem:[%s3267] sm:$0xff] %vm3186, %v3220
      %3269 = vst.msk [vmem:[%s3267 + $0x8] sm:$0xff] %vm3186, %v3222
      %3270 = vst.msk [vmem:[%s3267 + $0x20] sm:$0xff] %vm3186, %v3224
      %3271 = vst.msk [vmem:[%s3267 + $0x28] sm:$0xff] %vm3186, %v3226
      %3272 = vst.msk [vmem:[%s3267 + $0x40] sm:$0xff] %vm3186, %v3228
      %3273 = vst.msk [vmem:[%s3267 + $0x48] sm:$0xff] %vm3186, %v3230
      %3274 = vst.msk [vmem:[%s3267 + $0x60] sm:$0xff] %vm3186, %v3232
      %3275 = vst.msk [vmem:[%s3267 + $0x68] sm:$0xff] %vm3186, %v3234
      %3276 = vst.msk [vmem:[%s3267 + $0x80] sm:$0xff] %vm3186, %v3236
      %3277 = vst.msk [vmem:[%s3267 + $0x88] sm:$0xff] %vm3186, %v3238
      %3278 = vst.msk [vmem:[%s3267 + $0xa0] sm:$0xff] %vm3186, %v3240
      %3279 = vst.msk [vmem:[%s3267 + $0xa8] sm:$0xff] %vm3186, %v3242
      %3280 = vst.msk [vmem:[%s3267 + $0xc0] sm:$0xff] %vm3186, %v3244
      %3281 = vst.msk [vmem:[%s3267 + $0xc8] sm:$0xff] %vm3186, %v3246
      %3282 = vst.msk [vmem:[%s3267 + $0xe0] sm:$0xff] %vm3186, %v3248
      %3283 = vst.msk [vmem:[%s3267 + $0xe8] sm:$0xff] %vm3186, %v3250
      %s3284 = smul.u32 8, %s21
      %p3285 = scmp.lt.s32.totalorder %s20, 1
      %s3286 = scalar_select %p3285, %s20, 1
      %p3287 = scmp.lt.s32.totalorder %s3284, 15
      %s3288 = scalar_select %p3287, %s3284, 15
      %s3289 = smul.addr %s3288, 4
      %s3290 = smul.addr %s3286, 64
      %s3291 = sadd.s32 %s3289, %s3290
      %s3292 = smul.addr %s3291, 8
      %s3293 = scalar_lea.vmem %s5, %s3292
      // Predicated region
      $region41: #{tpu_custom_call.1} parent=39 // pred_check
        %p3294 = pneg %p190
      $region42: #{tpu_custom_call.1} parent=39 // pred_check_branch
        %3296 = sbr.rel (%p3294) target = $region44
      $region43: #{tpu_custom_call.1} parent=39 // pred_region
        %s3297 = smul.u32 8, %s21
      $region44: #{tpu_custom_call.1} parent=39 // pred_fallthru
        _
    $region40: #{tpu_custom_call.1} parent=5 // pred_fallthru
      _
    %p3298 = scmp.le.s32.totalorder 2, %s11
    // Predicated region
    $region45: #{tpu_custom_call.1} parent=5 // pred_check
      %p3299 = pneg %p3298
    $region46: #{tpu_custom_call.1} parent=5 // pred_check_branch
      %3301 = sbr.rel (%p3299) target = $region48
    $region47: #{tpu_custom_call.1} parent=5 // pred_region
      %s3302 = ssub.s32 %s11, 2
      // Predicated region
      $region49: #{tpu_custom_call.1} parent=47 // pred_check
        %p3303 = pneg %p196
      $region50: #{tpu_custom_call.1} parent=47 // pred_check_branch
        %3305 = sbr.rel (%p3303) target = $region52
      $region51: #{tpu_custom_call.1} parent=47 // pred_region
        %s3306 = smul.u32 8, %s23
        %p3307 = scmp.lt.s32.totalorder %s22, 1
        %s3308 = scalar_select %p3307, %s22, 1
        %p3309 = scmp.lt.s32.totalorder %s3306, 15
        %s3310 = scalar_select %p3309, %s3306, 15
        %s3311 = smul.addr %s3310, 4
        %s3312 = smul.addr %s3308, 64
        %s3313 = sadd.s32 %s3311, %s3312
        %s3314 = smul.addr %s3313, 8
        %s3315 = scalar_lea.vmem %s5, %s3314
      $region52: #{tpu_custom_call.1} parent=47 // pred_fallthru
        _
    $region48: #{tpu_custom_call.1} parent=5 // pred_fallthru
      _
  $region6: #{tpu_custom_call.1} parent=0 // loop_footer
    %s15 = sadd.s32 1, %s11
  $region7: #{tpu_custom_call.1} parent=0 // loop_footer_branch
    %10 = sbr.rel target = $region3
  $region8: #{tpu_custom_call.1} parent=0 // loop_exit
    _

</llo_original>
